<compile_context>
chip_gen: v5e
topology: v5e:2x2
jax: 0.10.0
libtpu: 0.0.40
codegen_flags: <defaults>
</compile_context>

<pallas_src>
import functools

import jax
import jax.numpy as jnp
from jax import lax
from jax.experimental import pallas as pl
from jax.experimental.pallas import tpu as pltpu


VMEM_LIMIT = 56 * 1024 * 1024  # explicit scoped-VMEM budget (v7x-safe)


# ------------------------------ tiling helpers ------------------------------

def _row_tile(T, target=256):
    """Largest row tile <= target that divides T and is sublane-aligned (x8)."""
    if T <= target:
        return T
    for tm in range(min(target, T), 7, -1):
        if T % tm == 0 and tm % 8 == 0:
            return tm
    return T


def _col_tile(N, target=512):
    """Lane-aligned (x128) divisor of N, or the full dim when small."""
    if N <= target:
        return N
    for t in range(min(target, N), 127, -1):
        if N % t == 0 and t % 128 == 0:
            return t
    return N


# ------------------------------ RMSNorm kernel ------------------------------

def _rmsnorm_kernel(x_ref, w_ref, o_ref, *, eps):
    x = x_ref[...].astype(jnp.float32)
    var = jnp.mean(x * x, axis=-1, keepdims=True)
    o_ref[...] = (w_ref[...].astype(jnp.float32)
                  * (x * lax.rsqrt(var + eps))).astype(o_ref.dtype)


def rmsnorm_rows(x, w2d, eps):
    # Pure mem-bound row kernel -> large row tile (target 512).
    T, D = x.shape
    tm = _row_tile(T, target=512)
    return pl.pallas_call(
        functools.partial(_rmsnorm_kernel, eps=eps),
        grid=(T // tm,),
        in_specs=[pl.BlockSpec((tm, D), lambda i: (i, 0)),
                  pl.BlockSpec((1, D), lambda i: (0, 0))],
        out_specs=pl.BlockSpec((tm, D), lambda i: (i, 0)),
        out_shape=jax.ShapeDtypeStruct((T, D), x.dtype),
        compiler_params=pltpu.CompilerParams(
            dimension_semantics=("parallel",),
            vmem_limit_bytes=VMEM_LIMIT),
    )(x, w2d)


# ----------------------- fused input-norm + q/kv proj -----------------------

def _qkv_kernel(x_ref, wln_ref, wqk_ref, wkva_ref, wkvaln_ref, wkvb_ref,
                qk_ref, kv_ref, *, eps):
    # input RMSNorm -> [q_proj | kpe columns of kv_a] (one lane-dense write)
    #                -> kv_a latent -> kv_a RMSNorm -> kv_b_proj.
    x = x_ref[...].astype(jnp.float32)
    var = jnp.mean(x * x, axis=-1, keepdims=True)
    xb = ((x * lax.rsqrt(var + eps))
          * wln_ref[...].astype(jnp.float32)).astype(jnp.bfloat16)

    qk_ref[...] = jnp.dot(xb, wqk_ref[...],
                          preferred_element_type=jnp.float32).astype(qk_ref.dtype)

    c = jnp.dot(xb, wkva_ref[...], preferred_element_type=jnp.float32)
    cvar = jnp.mean(c * c, axis=-1, keepdims=True)
    cb = ((c * lax.rsqrt(cvar + eps))
          * wkvaln_ref[...].astype(jnp.float32)).astype(jnp.bfloat16)
    kv_ref[...] = jnp.dot(cb, wkvb_ref[...],
                          preferred_element_type=jnp.float32).astype(kv_ref.dtype)


def qkv_proj(x, p, cfg):
    # x: (T, D) f32. Weights pre-transposed bf16 (in_features, out_features).
    T, D = x.shape
    NQK = p["wq_kpe_t"].shape[1]     # H*(dn+dr) + dr  (kpe packed into q slab)
    kvr = cfg["kv_lora_rank"]
    NKV = p["wkvb_t"].shape[1]
    tm = _row_tile(T, target=256)
    return pl.pallas_call(
        functools.partial(_qkv_kernel, eps=cfg["rms_norm_eps"]),
        grid=(T // tm,),
        in_specs=[
            pl.BlockSpec((tm, D), lambda i: (i, 0)),
            pl.BlockSpec((1, D), lambda i: (0, 0)),
            pl.BlockSpec((D, NQK), lambda i: (0, 0)),
            pl.BlockSpec((D, kvr), lambda i: (0, 0)),
            pl.BlockSpec((1, kvr), lambda i: (0, 0)),
            pl.BlockSpec((kvr, NKV), lambda i: (0, 0)),
        ],
        out_specs=[
            pl.BlockSpec((tm, NQK), lambda i: (i, 0)),
            pl.BlockSpec((tm, NKV), lambda i: (i, 0)),
        ],
        out_shape=[
            jax.ShapeDtypeStruct((T, NQK), jnp.bfloat16),
            jax.ShapeDtypeStruct((T, NKV), jnp.bfloat16),
        ],
        compiler_params=pltpu.CompilerParams(
            dimension_semantics=("parallel",),
            vmem_limit_bytes=VMEM_LIMIT),
    )(x, p["input_ln"], p["wq_kpe_t"], p["wkva_c_t"], p["kv_a_ln"], p["wkvb_t"])


# --------------------------- MLA attention kernel ---------------------------

def _mla_attn_kernel(*refs, scale, with_mask):
    if with_mask:
        (qn_ref, qp_ref, kn_ref, kp_ref, v_ref, res_ref, wo_ref, mask_ref,
         o_ref, m_sc, l_sc, acc_sc, ctx_sc) = refs
    else:
        (qn_ref, qp_ref, kn_ref, kp_ref, v_ref, res_ref, wo_ref,
         o_ref, m_sc, l_sc, acc_sc, ctx_sc) = refs
        mask_ref = None

    ki = pl.program_id(2)

    @pl.when(ki == 0)
    def _init():
        m_sc[...] = jnp.full(m_sc.shape, -1e30, m_sc.dtype)  # finite: no -inf NaNs
        l_sc[...] = jnp.zeros(l_sc.shape, l_sc.dtype)
        acc_sc[...] = jnp.zeros(acc_sc.shape, acc_sc.dtype)

    qn = qn_ref[0].astype(jnp.bfloat16)      # (H, tq,  dn)
    qp = qp_ref[0].astype(jnp.bfloat16)      # (H, tq,  dr)
    kn = kn_ref[0].astype(jnp.bfloat16)      # (H, tkv, dn)
    kp = kp_ref[0, 0].astype(jnp.bfloat16)   # (tkv, dr)  -- shared across heads
    vv = v_ref[0].astype(jnp.bfloat16)       # (H, tkv, dv)

    nh, tq, _ = qn.shape
    dr = qp.shape[-1]

    # scores = q_nope.k_nope^T + q_pe.k_pe^T  (no concat / head broadcast)
    s = jnp.einsum('hqd,hkd->hqk', qn, kn, preferred_element_type=jnp.float32)
    s_pe = lax.dot_general(qp.reshape(nh * tq, dr), kp,
                           (((1,), (1,)), ((), ())),
                           preferred_element_type=jnp.float32)
    s = (s + s_pe.reshape(nh, tq, -1)) * scale
    if with_mask:
        s = s + mask_ref[0][None].astype(jnp.float32)

    m_prev = m_sc[...]
    m_new = jnp.maximum(m_prev, s.max(axis=-1, keepdims=True))
    alpha = jnp.exp(m_prev - m_new)
    p = jnp.exp(s - m_new)
    l_sc[...] = alpha * l_sc[...] + p.sum(axis=-1, keepdims=True)
    acc_sc[...] = alpha * acc_sc[...] + jnp.einsum(
        'hqk,hkd->hqd', p.astype(jnp.bfloat16), vv,
        preferred_element_type=jnp.float32)
    m_sc[...] = m_new

    @pl.when(ki == pl.num_programs(2) - 1)
    def _finish():
        dv = acc_sc.shape[-1]
        l = jnp.maximum(l_sc[...], 1e-30)          # fully-masked-row guard
        ctx = acc_sc[...] / l                      # (H, tq, dv) f32, exact div
        # Pack per-head context into a lane-dense (tq, H*dv) scratch, then a
        # single K=H*dv o_proj matmul (keeps the 256-wide MXU full).
        for hh in range(acc_sc.shape[0]):
            ctx_sc[:, hh * dv:(hh + 1) * dv] = ctx[hh].astype(ctx_sc.dtype)
        proj = jnp.dot(ctx_sc[...], wo_ref[...],
                       preferred_element_type=jnp.float32)
        o_ref[0] = (res_ref[0].astype(jnp.float32) + proj).astype(o_ref.dtype)


def mla_attention(q_nope, q_pe, k_nope, k_pe, v, h_res, wo_t, mask, scale):
    # q_nope/q_pe/k_nope: (B,H,S,dn|dr) bf16, k_pe: (B,1,S,dr) bf16,
    # v: (B,H,S,dv) bf16, h_res: (B,S,D) f32, wo_t: (H*dv, D) bf16.
    # mask: None or (nb, S, S) additive with nb in {1, B}.
    B, H, S, dn = q_nope.shape
    dr = q_pe.shape[-1]
    dv = v.shape[-1]
    D = h_res.shape[-1]
    tq = _row_tile(S, target=256)
    tkv = _col_tile(S, target=256)
    nq, nkv = S // tq, S // tkv
    with_mask = mask is not None

    in_specs = [
        pl.BlockSpec((1, H, tq, dn), lambda b, qi, ki: (b, 0, qi, 0)),
        pl.BlockSpec((1, H, tq, dr), lambda b, qi, ki: (b, 0, qi, 0)),
        pl.BlockSpec((1, H, tkv, dn), lambda b, qi, ki: (b, 0, ki, 0)),
        pl.BlockSpec((1, 1, tkv, dr), lambda b, qi, ki: (b, 0, ki, 0)),
        pl.BlockSpec((1, H, tkv, dv), lambda b, qi, ki: (b, 0, ki, 0)),
        pl.BlockSpec((1, tq, D), lambda b, qi, ki: (b, qi, 0)),
        pl.BlockSpec((H * dv, D), lambda b, qi, ki: (0, 0)),
    ]
    args = [q_nope, q_pe, k_nope, k_pe, v, h_res, wo_t]
    if with_mask:
        if mask.shape[0] == 1:
            in_specs.append(pl.BlockSpec((1, tq, tkv), lambda b, qi, ki: (0, qi, ki)))
        else:
            in_specs.append(pl.BlockSpec((1, tq, tkv), lambda b, qi, ki: (b, qi, ki)))
        args.append(mask)

    return pl.pallas_call(
        functools.partial(_mla_attn_kernel, scale=scale, with_mask=with_mask),
        grid=(B, nq, nkv),
        in_specs=in_specs,
        out_specs=pl.BlockSpec((1, tq, D), lambda b, qi, ki: (b, qi, 0)),
        out_shape=jax.ShapeDtypeStruct((B, S, D), h_res.dtype),
        scratch_shapes=[
            pltpu.VMEM((H, tq, 1), jnp.float32),      # running max
            pltpu.VMEM((H, tq, 1), jnp.float32),      # running denom
            pltpu.VMEM((H, tq, dv), jnp.float32),     # running numerator
            pltpu.VMEM((tq, H * dv), jnp.bfloat16),   # packed context for o_proj
        ],
        compiler_params=pltpu.CompilerParams(
            dimension_semantics=("parallel", "parallel", "arbitrary"),
            vmem_limit_bytes=VMEM_LIMIT),
    )(*args)


# -------------------- fused post-norm + SiLU MLP + residual ------------------

def _mlp_kernel(h_ref, wln_ref, wg_ref, wu_ref, wd_ref, o_ref, xn_sc, acc_sc,
                *, eps):
    # Reduction over I-chunks: gate/up tiled over N, down tiled over K.
    j = pl.program_id(1)

    @pl.when(j == 0)
    def _init():
        h = h_ref[...].astype(jnp.float32)
        var = jnp.mean(h * h, axis=-1, keepdims=True)
        xn_sc[...] = ((h * lax.rsqrt(var + eps))
                      * wln_ref[...].astype(jnp.float32)).astype(xn_sc.dtype)
        acc_sc[...] = jnp.zeros(acc_sc.shape, acc_sc.dtype)

    xb = xn_sc[...]
    g = jnp.dot(xb, wg_ref[...], preferred_element_type=jnp.float32)
    u = jnp.dot(xb, wu_ref[...], preferred_element_type=jnp.float32)
    a = (g * jax.nn.sigmoid(g)) * u
    acc_sc[...] += jnp.dot(a.astype(jnp.bfloat16), wd_ref[...],
                           preferred_element_type=jnp.float32)

    @pl.when(j == pl.num_programs(1) - 1)
    def _finish():
        o_ref[...] = (h_ref[...].astype(jnp.float32) + acc_sc[...]).astype(o_ref.dtype)


def mlp_block(h, p, cfg):
    T, D = h.shape
    I = p["wg_t"].shape[1]
    tm = _row_tile(T, target=256)
    ti = _col_tile(I, target=512)
    return pl.pallas_call(
        functools.partial(_mlp_kernel, eps=cfg["rms_norm_eps"]),
        grid=(T // tm, I // ti),
        in_specs=[
            pl.BlockSpec((tm, D), lambda i, j: (i, 0)),
            pl.BlockSpec((1, D), lambda i, j: (0, 0)),
            pl.BlockSpec((D, ti), lambda i, j: (0, j)),
            pl.BlockSpec((D, ti), lambda i, j: (0, j)),
            pl.BlockSpec((ti, D), lambda i, j: (j, 0)),
        ],
        out_specs=pl.BlockSpec((tm, D), lambda i, j: (i, 0)),
        out_shape=jax.ShapeDtypeStruct((T, D), h.dtype),
        scratch_shapes=[
            pltpu.VMEM((tm, D), jnp.bfloat16),   # normalized activations
            pltpu.VMEM((tm, D), jnp.float32),    # down-proj accumulator
        ],
        compiler_params=pltpu.CompilerParams(
            dimension_semantics=("parallel", "arbitrary"),
            vmem_limit_bytes=VMEM_LIMIT),
    )(h, p["post_ln"], p["wg_t"], p["wu_t"], p["wd_t"])


# ------------------------------ RoPE (JAX glue) ------------------------------

def rope_cos_sin(seq_len, dim, theta):
    inv_freq = 1.0 / (theta ** (jnp.arange(0, dim, 2, dtype=jnp.float32) / dim))
    t = jnp.arange(seq_len, dtype=jnp.float32)
    freqs = jnp.outer(t, inv_freq)                      # (S, dim/2)
    emb = jnp.concatenate([freqs, freqs], axis=-1)      # (S, dim)
    return jnp.cos(emb), jnp.sin(emb)


def _rotate_half(x):
    x1, x2 = jnp.split(x, 2, axis=-1)
    return jnp.concatenate([-x2, x1], axis=-1)


def apply_rope(q, k, cos, sin):
    # DeepSeek apply_rotary_pos_emb: interleave reorder then rotate_half form.
    def interleave(x):
        b, h, s, d = x.shape
        return x.reshape(b, h, s, d // 2, 2).swapaxes(-1, -2).reshape(b, h, s, d)

    q = interleave(q)
    k = interleave(k)
    cos = cos[None, None]
    sin = sin[None, None]
    q_emb = q * cos + _rotate_half(q) * sin
    k_emb = k * cos + _rotate_half(k) * sin
    return q_emb, k_emb


# ----------------------------- model forward pass ----------------------------

def decoder_layer(h, p, cfg, mask, cos, sin):
    B, S, D = h.shape
    H = cfg["num_attention_heads"]
    dn = cfg["qk_nope_head_dim"]
    dr = cfg["qk_rope_head_dim"]
    dv = cfg["v_head_dim"]
    dq = dn + dr
    NQ = H * dq
    scale = dq ** -0.5
    T = B * S

    # fused input-norm + q/kv projections (bf16 outputs, kpe packed into q slab)
    q_kpe, kv = qkv_proj(h.reshape(T, D), p, cfg)

    q = q_kpe[:, :NQ].reshape(B, S, H, dq).transpose(0, 2, 1, 3)   # (B,H,S,dq)
    q_nope, q_pe = q[..., :dn], q[..., dn:]
    k_pe = q_kpe[:, NQ:].reshape(B, 1, S, dr)                      # (B,1,S,dr)
    kv = kv.reshape(B, S, H, dn + dv).transpose(0, 2, 1, 3)        # (B,H,S,dn+dv)
    k_nope, v = kv[..., :dn], kv[..., dn:]

    q_pe, k_pe = apply_rope(q_pe, k_pe, cos, sin)
    q_pe = q_pe.astype(jnp.bfloat16)
    k_pe = k_pe.astype(jnp.bfloat16)

    # fused MLA attention + o_proj + residual (1 pallas_call, q- and kv-tiled)
    h = mla_attention(q_nope, q_pe, k_nope, k_pe, v, h, p["wo_t"], mask, scale)

    # fused post-norm + SiLU MLP + residual (1 pallas_call, I-reduction-tiled)
    h = mlp_block(h.reshape(T, D), p, cfg).reshape(B, S, D)
    return h


def deepseek_transformer(h, params, cfg, attention_mask=None):
    B, S, D = h.shape
    cos, sin = rope_cos_sin(S, cfg["qk_rope_head_dim"], cfg["rope_theta"])
    mask = None
    if attention_mask is not None:
        m = jnp.asarray(attention_mask, jnp.float32)
        mask = m.reshape((-1,) + m.shape[-2:])   # (1,S,S) shared or (B,S,S)
    for p in params["layers"]:
        h = decoder_layer(h, p, cfg, mask, cos, sin)
    return rmsnorm_rows(h.reshape(B * S, D), params["norm"],
                        cfg["rms_norm_eps"]).reshape(B, S, D)


# --------------------------- deterministic parameters ------------------------

def init_params(key, cfg):
    """Torch-convention (out_features, in_features) f32 weights."""
    D = cfg["hidden_size"]
    I = cfg["intermediate_size"]
    H = cfg["num_attention_heads"]
    dn = cfg["qk_nope_head_dim"]
    dr = cfg["qk_rope_head_dim"]
    dv = cfg["v_head_dim"]
    kvr = cfg["kv_lora_rank"]

    def w(k, shape):
        return 0.02 * jax.random.normal(k, shape, jnp.float32)

    layers = []
    for li in range(cfg["num_hidden_layers"]):
        ks = jax.random.split(jax.random.fold_in(key, li), 7)
        layers.append(dict(
            input_ln=jnp.ones((D,), jnp.float32),
            q_proj=w(ks[0], (H * (dn + dr), D)),
            kv_a_proj=w(ks[1], (kvr + dr, D)),
            kv_a_ln=jnp.ones((kvr,), jnp.float32),
            kv_b_proj=w(ks[2], (H * (dn + dv), kvr)),
            o_proj=w(ks[3], (D, H * dv)),
            post_ln=jnp.ones((D,), jnp.float32),
            gate_proj=w(ks[4], (I, D)),
            up_proj=w(ks[5], (I, D)),
            down_proj=w(ks[6], (D, I)),
        ))
    return dict(layers=layers, norm=jnp.ones((D,), jnp.float32))


def prepare_params(raw, cfg):
    """One-time transpose to (in, out), bf16 cast, and kpe packing into q slab."""
    kvr = cfg["kv_lora_rank"]

    def prep(p):
        wq_t = p["q_proj"].T                       # (D, H*(dn+dr))
        wkva_t = p["kv_a_proj"].T                  # (D, kvr+dr)
        wq_kpe_t = jnp.concatenate([wq_t, wkva_t[:, kvr:]], axis=1)
        return dict(
            input_ln=p["input_ln"].reshape(1, -1).astype(jnp.float32),
            wq_kpe_t=wq_kpe_t.astype(jnp.bfloat16),
            wkva_c_t=wkva_t[:, :kvr].astype(jnp.bfloat16),
            kv_a_ln=p["kv_a_ln"].reshape(1, -1).astype(jnp.float32),
            wkvb_t=p["kv_b_proj"].T.astype(jnp.bfloat16),
            wo_t=p["o_proj"].T.astype(jnp.bfloat16),
            post_ln=p["post_ln"].reshape(1, -1).astype(jnp.float32),
            wg_t=p["gate_proj"].T.astype(jnp.bfloat16),
            wu_t=p["up_proj"].T.astype(jnp.bfloat16),
            wd_t=p["down_proj"].T.astype(jnp.bfloat16),
        )

    return dict(layers=[prep(p) for p in raw["layers"]],
                norm=raw["norm"].reshape(1, -1).astype(jnp.float32))


# ------------------------------------ main -----------------------------------

if __name__ == "__main__":
    cfg = dict(
        hidden_size=32,
        intermediate_size=64,
        num_hidden_layers=2,
        num_attention_heads=2,
        qk_nope_head_dim=16,
        qk_rope_head_dim=8,
        v_head_dim=16,
        kv_lora_rank=16,
        rms_norm_eps=1e-6,
        rope_theta=10000.0,
    )

    key = jax.random.PRNGKey(0)
    raw_params = init_params(key, cfg)
    params = prepare_params(raw_params, cfg)

    B, S, D = 2, 8, cfg["hidden_size"]
    x = jax.random.normal(jax.random.fold_in(key, 1234), (B, S, D), jnp.float32)

    @jax.jit
    def forward(h, ps):
        return deepseek_transformer(h, ps, cfg, attention_mask=None)

    out = jax.block_until_ready(forward(x, params))

    assert out.shape == (B, S, D)
    assert bool(jnp.all(jnp.isfinite(out)))
    print("KERNEL_OK")
</pallas_src>

<mosaic_0001>
module attributes {stable_mosaic.version = 11 : i64} {
  func.func @_qkv_kernel(%arg0: i32, %arg1: memref<16x32xf32, #tpu.memory_space<vmem>>, %arg2: memref<1x32xf32, #tpu.memory_space<vmem>>, %arg3: memref<32x56xbf16, #tpu.memory_space<vmem>>, %arg4: memref<32x16xbf16, #tpu.memory_space<vmem>>, %arg5: memref<1x16xf32, #tpu.memory_space<vmem>>, %arg6: memref<16x64xbf16, #tpu.memory_space<vmem>>, %arg7: memref<16x56xbf16, #tpu.memory_space<vmem>>, %arg8: memref<16x64xbf16, #tpu.memory_space<vmem>>) attributes {dimension_semantics = [#tpu.dimension_semantics<parallel>], iteration_bounds = array<i64: 1>, scalar_prefetch = 0 : i64, scratch_operands = 0 : i64, tpu.core_type = #tpu.core_type<tc>, window_params = [{transform_indices = @transform_0, window_bounds = array<i64: 16, 32>}, {pipeline_mode = #tpu.pipeline_mode<synchronous>, transform_indices = @transform_1, window_bounds = array<i64: 1, 32>}, {pipeline_mode = #tpu.pipeline_mode<synchronous>, transform_indices = @transform_2, window_bounds = array<i64: 32, 56>}, {pipeline_mode = #tpu.pipeline_mode<synchronous>, transform_indices = @transform_3, window_bounds = array<i64: 32, 16>}, {pipeline_mode = #tpu.pipeline_mode<synchronous>, transform_indices = @transform_4, window_bounds = array<i64: 1, 16>}, {pipeline_mode = #tpu.pipeline_mode<synchronous>, transform_indices = @transform_5, window_bounds = array<i64: 16, 64>}, {transform_indices = @transform_6, window_bounds = array<i64: 16, 56>}, {transform_indices = @transform_7, window_bounds = array<i64: 16, 64>}]} {
    %c0 = arith.constant 0 : index
    %c0_0 = arith.constant 0 : index
    %0 = vector.load %arg1[%c0, %c0_0] : memref<16x32xf32, #tpu.memory_space<vmem>>, vector<16x32xf32>
    %1 = arith.mulf %0, %0 : vector<16x32xf32>
    %cst = arith.constant dense<0.000000e+00> : vector<16xf32>
    %2 = vector.multi_reduction <add>, %1, %cst [1] : vector<16x32xf32> to vector<16xf32>
    %3 = vector.shape_cast %2 : vector<16xf32> to vector<16x1xf32>
    %cst_1 = arith.constant 3.200000e+01 : f32
    %4 = vector.broadcast %cst_1 : f32 to vector<16x1xf32>
    %5 = arith.divf %3, %4 : vector<16x1xf32>
    %cst_2 = arith.constant 9.99999997E-7 : f32
    %6 = vector.broadcast %cst_2 : f32 to vector<16x1xf32>
    %7 = arith.addf %5, %6 : vector<16x1xf32>
    %8 = math.rsqrt %7 : vector<16x1xf32>
    %9 = vector.broadcast %8 : vector<16x1xf32> to vector<16x32xf32>
    %10 = arith.mulf %0, %9 : vector<16x32xf32>
    %c0_3 = arith.constant 0 : index
    %c0_4 = arith.constant 0 : index
    %11 = vector.load %arg2[%c0_3, %c0_4] : memref<1x32xf32, #tpu.memory_space<vmem>>, vector<1x32xf32>
    %12 = vector.broadcast %11 : vector<1x32xf32> to vector<16x32xf32>
    %13 = arith.mulf %10, %12 : vector<16x32xf32>
    %14 = arith.truncf %13 : vector<16x32xf32> to vector<16x32xbf16>
    %c0_5 = arith.constant 0 : index
    %c0_6 = arith.constant 0 : index
    %15 = vector.load %arg3[%c0_5, %c0_6] : memref<32x56xbf16, #tpu.memory_space<vmem>>, vector<32x56xbf16>
    %cst_7 = arith.constant dense<0.000000e+00> : vector<16x56xf32>
    %16 = tpu.matmul %14, %15, %cst_7 {dimension_numbers = #tpu.dot_dimension_numbers<[1], [0], [0], [1], [0, 0, 1, 1], [], []>} : vector<16x32xbf16>, vector<32x56xbf16>, vector<16x56xf32> -> vector<16x56xf32>
    %17 = arith.truncf %16 : vector<16x56xf32> to vector<16x56xbf16>
    %c0_8 = arith.constant 0 : index
    %c0_9 = arith.constant 0 : index
    %18 = vector.load %arg7[%c0_8, %c0_9] : memref<16x56xbf16, #tpu.memory_space<vmem>>, vector<16x56xbf16>
    tpu.vector_store %arg7[%c0_8, %c0_9], %17 {strides = array<i32>} : memref<16x56xbf16, #tpu.memory_space<vmem>>, vector<16x56xbf16>,
    %c0_10 = arith.constant 0 : index
    %c0_11 = arith.constant 0 : index
    %19 = vector.load %arg4[%c0_10, %c0_11] : memref<32x16xbf16, #tpu.memory_space<vmem>>, vector<32x16xbf16>
    %cst_12 = arith.constant dense<0.000000e+00> : vector<16x16xf32>
    %20 = tpu.matmul %14, %19, %cst_12 {dimension_numbers = #tpu.dot_dimension_numbers<[1], [0], [0], [1], [0, 0, 1, 1], [], []>} : vector<16x32xbf16>, vector<32x16xbf16>, vector<16x16xf32> -> vector<16x16xf32>
    %21 = arith.mulf %20, %20 : vector<16x16xf32>
    %cst_13 = arith.constant dense<0.000000e+00> : vector<16xf32>
    %22 = vector.multi_reduction <add>, %21, %cst_13 [1] : vector<16x16xf32> to vector<16xf32>
    %23 = vector.shape_cast %22 : vector<16xf32> to vector<16x1xf32>
    %cst_14 = arith.constant 1.600000e+01 : f32
    %24 = vector.broadcast %cst_14 : f32 to vector<16x1xf32>
    %25 = arith.divf %23, %24 : vector<16x1xf32>
    %cst_15 = arith.constant 9.99999997E-7 : f32
    %26 = vector.broadcast %cst_15 : f32 to vector<16x1xf32>
    %27 = arith.addf %25, %26 : vector<16x1xf32>
    %28 = math.rsqrt %27 : vector<16x1xf32>
    %29 = vector.broadcast %28 : vector<16x1xf32> to vector<16x16xf32>
    %30 = arith.mulf %20, %29 : vector<16x16xf32>
    %c0_16 = arith.constant 0 : index
    %c0_17 = arith.constant 0 : index
    %31 = vector.load %arg5[%c0_16, %c0_17] : memref<1x16xf32, #tpu.memory_space<vmem>>, vector<1x16xf32>
    %32 = vector.broadcast %31 : vector<1x16xf32> to vector<16x16xf32>
    %33 = arith.mulf %30, %32 : vector<16x16xf32>
    %34 = arith.truncf %33 : vector<16x16xf32> to vector<16x16xbf16>
    %c0_18 = arith.constant 0 : index
    %c0_19 = arith.constant 0 : index
    %35 = vector.load %arg6[%c0_18, %c0_19] : memref<16x64xbf16, #tpu.memory_space<vmem>>, vector<16x64xbf16>
    %cst_20 = arith.constant dense<0.000000e+00> : vector<16x64xf32>
    %36 = tpu.matmul %34, %35, %cst_20 {dimension_numbers = #tpu.dot_dimension_numbers<[1], [0], [0], [1], [0, 0, 1, 1], [], []>} : vector<16x16xbf16>, vector<16x64xbf16>, vector<16x64xf32> -> vector<16x64xf32>
    %37 = arith.truncf %36 : vector<16x64xf32> to vector<16x64xbf16>
    %c0_21 = arith.constant 0 : index
    %c0_22 = arith.constant 0 : index
    %38 = vector.load %arg8[%c0_21, %c0_22] : memref<16x64xbf16, #tpu.memory_space<vmem>>, vector<16x64xbf16>
    tpu.vector_store %arg8[%c0_21, %c0_22], %37 {strides = array<i32>} : memref<16x64xbf16, #tpu.memory_space<vmem>>, vector<16x64xbf16>,
    return
  }
  func.func @transform_0(%arg0: i32) -> (i32, i32) {
    %c0_i32 = arith.constant 0 : i32
    %c0_i32_0 = arith.constant 0 : i32
    return %arg0, %c0_i32 : i32, i32
  }
  func.func @transform_1(%arg0: i32) -> (i32, i32) {
    %c0_i32 = arith.constant 0 : i32
    %c0_i32_0 = arith.constant 0 : i32
    %c0_i32_1 = arith.constant 0 : i32
    return %c0_i32, %c0_i32_0 : i32, i32
  }
  func.func @transform_2(%arg0: i32) -> (i32, i32) {
    %c0_i32 = arith.constant 0 : i32
    %c0_i32_0 = arith.constant 0 : i32
    %c0_i32_1 = arith.constant 0 : i32
    return %c0_i32, %c0_i32_0 : i32, i32
  }
  func.func @transform_3(%arg0: i32) -> (i32, i32) {
    %c0_i32 = arith.constant 0 : i32
    %c0_i32_0 = arith.constant 0 : i32
    %c0_i32_1 = arith.constant 0 : i32
    return %c0_i32, %c0_i32_0 : i32, i32
  }
  func.func @transform_4(%arg0: i32) -> (i32, i32) {
    %c0_i32 = arith.constant 0 : i32
    %c0_i32_0 = arith.constant 0 : i32
    %c0_i32_1 = arith.constant 0 : i32
    return %c0_i32, %c0_i32_0 : i32, i32
  }
  func.func @transform_5(%arg0: i32) -> (i32, i32) {
    %c0_i32 = arith.constant 0 : i32
    %c0_i32_0 = arith.constant 0 : i32
    %c0_i32_1 = arith.constant 0 : i32
    return %c0_i32, %c0_i32_0 : i32, i32
  }
  func.func @transform_6(%arg0: i32) -> (i32, i32) {
    %c0_i32 = arith.constant 0 : i32
    %c0_i32_0 = arith.constant 0 : i32
    return %arg0, %c0_i32 : i32, i32
  }
  func.func @transform_7(%arg0: i32) -> (i32, i32) {
    %c0_i32 = arith.constant 0 : i32
    %c0_i32_0 = arith.constant 0 : i32
    return %arg0, %c0_i32 : i32, i32
  }
}

module attributes {stable_mosaic.version = 11 : i64} {
  func.func @_mlp_kernel(%arg0: i32, %arg1: i32, %arg2: memref<16x32xf32, #tpu.memory_space<vmem>>, %arg3: memref<1x32xf32, #tpu.memory_space<vmem>>, %arg4: memref<32x64xbf16, #tpu.memory_space<vmem>>, %arg5: memref<32x64xbf16, #tpu.memory_space<vmem>>, %arg6: memref<64x32xbf16, #tpu.memory_space<vmem>>, %arg7: memref<16x32xf32, #tpu.memory_space<vmem>>, %arg8: memref<16x32xbf16, #tpu.memory_space<vmem>>, %arg9: memref<16x32xf32, #tpu.memory_space<vmem>>) attributes {dimension_semantics = [#tpu.dimension_semantics<parallel>, #tpu.dimension_semantics<arbitrary>], iteration_bounds = array<i64: 1, 1>, scalar_prefetch = 0 : i64, scratch_operands = 2 : i64, tpu.core_type = #tpu.core_type<tc>, window_params = [{transform_indices = @transform_0, window_bounds = array<i64: 16, 32>}, {pipeline_mode = #tpu.pipeline_mode<synchronous>, transform_indices = @transform_1, window_bounds = array<i64: 1, 32>}, {transform_indices = @transform_2, window_bounds = array<i64: 32, 64>}, {transform_indices = @transform_3, window_bounds = array<i64: 32, 64>}, {transform_indices = @transform_4, window_bounds = array<i64: 64, 32>}, {transform_indices = @transform_5, window_bounds = array<i64: 16, 32>}]} {
    %c0_i32 = arith.constant 0 : i32
    %0 = arith.cmpi eq, %arg1, %c0_i32 : i32
    %1 = arith.extui %0 : i1 to i32
    %c0_i32_0 = arith.constant 0 : i32
    %2 = arith.cmpi ne, %1, %c0_i32_0 : i32
    scf.if %2 {
      %c0_17 = arith.constant 0 : index
      %c0_18 = arith.constant 0 : index
      %24 = vector.load %arg2[%c0_17, %c0_18] : memref<16x32xf32, #tpu.memory_space<vmem>>, vector<16x32xf32>
      %25 = arith.mulf %24, %24 : vector<16x32xf32>
      %cst_19 = arith.constant dense<0.000000e+00> : vector<16xf32>
      %26 = vector.multi_reduction <add>, %25, %cst_19 [1] : vector<16x32xf32> to vector<16xf32>
      %27 = vector.shape_cast %26 : vector<16xf32> to vector<16x1xf32>
      %cst_20 = arith.constant 3.200000e+01 : f32
      %28 = vector.broadcast %cst_20 : f32 to vector<16x1xf32>
      %29 = arith.divf %27, %28 : vector<16x1xf32>
      %cst_21 = arith.constant 9.99999997E-7 : f32
      %30 = vector.broadcast %cst_21 : f32 to vector<16x1xf32>
      %31 = arith.addf %29, %30 : vector<16x1xf32>
      %32 = math.rsqrt %31 : vector<16x1xf32>
      %33 = vector.broadcast %32 : vector<16x1xf32> to vector<16x32xf32>
      %34 = arith.mulf %24, %33 : vector<16x32xf32>
      %c0_22 = arith.constant 0 : index
      %c0_23 = arith.constant 0 : index
      %35 = vector.load %arg3[%c0_22, %c0_23] : memref<1x32xf32, #tpu.memory_space<vmem>>, vector<1x32xf32>
      %36 = vector.broadcast %35 : vector<1x32xf32> to vector<16x32xf32>
      %37 = arith.mulf %34, %36 : vector<16x32xf32>
      %38 = arith.truncf %37 : vector<16x32xf32> to vector<16x32xbf16>
      %c0_24 = arith.constant 0 : index
      %c0_25 = arith.constant 0 : index
      %39 = vector.load %arg8[%c0_24, %c0_25] : memref<16x32xbf16, #tpu.memory_space<vmem>>, vector<16x32xbf16>
      tpu.vector_store %arg8[%c0_24, %c0_25], %38 {strides = array<i32>} : memref<16x32xbf16, #tpu.memory_space<vmem>>, vector<16x32xbf16>,
      %cst_26 = arith.constant 0.000000e+00 : f32
      %40 = vector.broadcast %cst_26 : f32 to vector<16x32xf32>
      %c0_27 = arith.constant 0 : index
      %c0_28 = arith.constant 0 : index
      %41 = vector.load %arg9[%c0_27, %c0_28] : memref<16x32xf32, #tpu.memory_space<vmem>>, vector<16x32xf32>
      tpu.vector_store %arg9[%c0_27, %c0_28], %40 {strides = array<i32>} : memref<16x32xf32, #tpu.memory_space<vmem>>, vector<16x32xf32>,
    } else {
    }
    %c0 = arith.constant 0 : index
    %c0_1 = arith.constant 0 : index
    %3 = vector.load %arg8[%c0, %c0_1] : memref<16x32xbf16, #tpu.memory_space<vmem>>, vector<16x32xbf16>
    %c0_2 = arith.constant 0 : index
    %c0_3 = arith.constant 0 : index
    %4 = vector.load %arg4[%c0_2, %c0_3] : memref<32x64xbf16, #tpu.memory_space<vmem>>, vector<32x64xbf16>
    %cst = arith.constant dense<0.000000e+00> : vector<16x64xf32>
    %5 = tpu.matmul %3, %4, %cst {dimension_numbers = #tpu.dot_dimension_numbers<[1], [0], [0], [1], [0, 0, 1, 1], [], []>} : vector<16x32xbf16>, vector<32x64xbf16>, vector<16x64xf32> -> vector<16x64xf32>
    %c0_4 = arith.constant 0 : index
    %c0_5 = arith.constant 0 : index
    %6 = vector.load %arg5[%c0_4, %c0_5] : memref<32x64xbf16, #tpu.memory_space<vmem>>, vector<32x64xbf16>
    %cst_6 = arith.constant dense<0.000000e+00> : vector<16x64xf32>
    %7 = tpu.matmul %3, %6, %cst_6 {dimension_numbers = #tpu.dot_dimension_numbers<[1], [0], [0], [1], [0, 0, 1, 1], [], []>} : vector<16x32xbf16>, vector<32x64xbf16>, vector<16x64xf32> -> vector<16x64xf32>
    %8 = arith.negf %5 : vector<16x64xf32>
    %9 = math.exp %8 : vector<16x64xf32>
    %cst_7 = arith.constant 1.000000e+00 : f32
    %10 = vector.broadcast %cst_7 : f32 to vector<16x64xf32>
    %11 = arith.addf %10, %9 : vector<16x64xf32>
    %12 = arith.divf %10, %11 : vector<16x64xf32>
    %13 = arith.mulf %5, %12 : vector<16x64xf32>
    %14 = arith.mulf %13, %7 : vector<16x64xf32>
    %c0_8 = arith.constant 0 : index
    %c0_9 = arith.constant 0 : index
    %15 = vector.load %arg9[%c0_8, %c0_9] : memref<16x32xf32, #tpu.memory_space<vmem>>, vector<16x32xf32>
    %16 = arith.truncf %14 : vector<16x64xf32> to vector<16x64xbf16>
    %c0_10 = arith.constant 0 : index
    %c0_11 = arith.constant 0 : index
    %17 = vector.load %arg6[%c0_10, %c0_11] : memref<64x32xbf16, #tpu.memory_space<vmem>>, vector<64x32xbf16>
    %cst_12 = arith.constant dense<0.000000e+00> : vector<16x32xf32>
    %18 = tpu.matmul %16, %17, %cst_12 {dimension_numbers = #tpu.dot_dimension_numbers<[1], [0], [0], [1], [0, 0, 1, 1], [], []>} : vector<16x64xbf16>, vector<64x32xbf16>, vector<16x32xf32> -> vector<16x32xf32>
    %19 = arith.addf %15, %18 : vector<16x32xf32>
    %c0_13 = arith.constant 0 : index
    %c0_14 = arith.constant 0 : index
    %20 = vector.load %arg9[%c0_13, %c0_14] : memref<16x32xf32, #tpu.memory_space<vmem>>, vector<16x32xf32>
    tpu.vector_store %arg9[%c0_13, %c0_14], %19 {strides = array<i32>} : memref<16x32xf32, #tpu.memory_space<vmem>>, vector<16x32xf32>,
    %c0_i32_15 = arith.constant 0 : i32
    %21 = arith.cmpi eq, %arg1, %c0_i32_15 : i32
    %22 = arith.extui %21 : i1 to i32
    %c0_i32_16 = arith.constant 0 : i32
    %23 = arith.cmpi ne, %22, %c0_i32_16 : i32
    scf.if %23 {
      %c0_17 = arith.constant 0 : index
      %c0_18 = arith.constant 0 : index
      %24 = vector.load %arg2[%c0_17, %c0_18] : memref<16x32xf32, #tpu.memory_space<vmem>>, vector<16x32xf32>
      %c0_19 = arith.constant 0 : index
      %c0_20 = arith.constant 0 : index
      %25 = vector.load %arg9[%c0_19, %c0_20] : memref<16x32xf32, #tpu.memory_space<vmem>>, vector<16x32xf32>
      %26 = arith.addf %24, %25 : vector<16x32xf32>
      %c0_21 = arith.constant 0 : index
      %c0_22 = arith.constant 0 : index
      %27 = vector.load %arg7[%c0_21, %c0_22] : memref<16x32xf32, #tpu.memory_space<vmem>>, vector<16x32xf32>
      tpu.vector_store %arg7[%c0_21, %c0_22], %26 {strides = array<i32>} : memref<16x32xf32, #tpu.memory_space<vmem>>, vector<16x32xf32>,
    } else {
    }
    return
  }
  func.func @transform_0(%arg0: i32, %arg1: i32) -> (i32, i32) {
    %c0_i32 = arith.constant 0 : i32
    %c0_i32_0 = arith.constant 0 : i32
    return %arg0, %c0_i32 : i32, i32
  }
  func.func @transform_1(%arg0: i32, %arg1: i32) -> (i32, i32) {
    %c0_i32 = arith.constant 0 : i32
    %c0_i32_0 = arith.constant 0 : i32
    %c0_i32_1 = arith.constant 0 : i32
    return %c0_i32, %c0_i32_0 : i32, i32
  }
  func.func @transform_2(%arg0: i32, %arg1: i32) -> (i32, i32) {
    %c0_i32 = arith.constant 0 : i32
    %c0_i32_0 = arith.constant 0 : i32
    return %c0_i32, %arg1 : i32, i32
  }
  func.func @transform_3(%arg0: i32, %arg1: i32) -> (i32, i32) {
    %c0_i32 = arith.constant 0 : i32
    %c0_i32_0 = arith.constant 0 : i32
    return %c0_i32, %arg1 : i32, i32
  }
  func.func @transform_4(%arg0: i32, %arg1: i32) -> (i32, i32) {
    %c0_i32 = arith.constant 0 : i32
    %c0_i32_0 = arith.constant 0 : i32
    return %arg1, %c0_i32 : i32, i32
  }
  func.func @transform_5(%arg0: i32, %arg1: i32) -> (i32, i32) {
    %c0_i32 = arith.constant 0 : i32
    %c0_i32_0 = arith.constant 0 : i32
    return %arg0, %c0_i32 : i32, i32
  }
}

module attributes {stable_mosaic.version = 11 : i64} {
  func.func @_qkv_kernel(%arg0: i32, %arg1: memref<16x32xf32, #tpu.memory_space<vmem>>, %arg2: memref<1x32xf32, #tpu.memory_space<vmem>>, %arg3: memref<32x56xbf16, #tpu.memory_space<vmem>>, %arg4: memref<32x16xbf16, #tpu.memory_space<vmem>>, %arg5: memref<1x16xf32, #tpu.memory_space<vmem>>, %arg6: memref<16x64xbf16, #tpu.memory_space<vmem>>, %arg7: memref<16x56xbf16, #tpu.memory_space<vmem>>, %arg8: memref<16x64xbf16, #tpu.memory_space<vmem>>) attributes {dimension_semantics = [#tpu.dimension_semantics<parallel>], iteration_bounds = array<i64: 1>, scalar_prefetch = 0 : i64, scratch_operands = 0 : i64, tpu.core_type = #tpu.core_type<tc>, window_params = [{transform_indices = @transform_0, window_bounds = array<i64: 16, 32>}, {pipeline_mode = #tpu.pipeline_mode<synchronous>, transform_indices = @transform_1, window_bounds = array<i64: 1, 32>}, {pipeline_mode = #tpu.pipeline_mode<synchronous>, transform_indices = @transform_2, window_bounds = array<i64: 32, 56>}, {pipeline_mode = #tpu.pipeline_mode<synchronous>, transform_indices = @transform_3, window_bounds = array<i64: 32, 16>}, {pipeline_mode = #tpu.pipeline_mode<synchronous>, transform_indices = @transform_4, window_bounds = array<i64: 1, 16>}, {pipeline_mode = #tpu.pipeline_mode<synchronous>, transform_indices = @transform_5, window_bounds = array<i64: 16, 64>}, {transform_indices = @transform_6, window_bounds = array<i64: 16, 56>}, {transform_indices = @transform_7, window_bounds = array<i64: 16, 64>}]} {
    %c0 = arith.constant 0 : index
    %c0_0 = arith.constant 0 : index
    %0 = vector.load %arg1[%c0, %c0_0] : memref<16x32xf32, #tpu.memory_space<vmem>>, vector<16x32xf32>
    %1 = arith.mulf %0, %0 : vector<16x32xf32>
    %cst = arith.constant dense<0.000000e+00> : vector<16xf32>
    %2 = vector.multi_reduction <add>, %1, %cst [1] : vector<16x32xf32> to vector<16xf32>
    %3 = vector.shape_cast %2 : vector<16xf32> to vector<16x1xf32>
    %cst_1 = arith.constant 3.200000e+01 : f32
    %4 = vector.broadcast %cst_1 : f32 to vector<16x1xf32>
    %5 = arith.divf %3, %4 : vector<16x1xf32>
    %cst_2 = arith.constant 9.99999997E-7 : f32
    %6 = vector.broadcast %cst_2 : f32 to vector<16x1xf32>
    %7 = arith.addf %5, %6 : vector<16x1xf32>
    %8 = math.rsqrt %7 : vector<16x1xf32>
    %9 = vector.broadcast %8 : vector<16x1xf32> to vector<16x32xf32>
    %10 = arith.mulf %0, %9 : vector<16x32xf32>
    %c0_3 = arith.constant 0 : index
    %c0_4 = arith.constant 0 : index
    %11 = vector.load %arg2[%c0_3, %c0_4] : memref<1x32xf32, #tpu.memory_space<vmem>>, vector<1x32xf32>
    %12 = vector.broadcast %11 : vector<1x32xf32> to vector<16x32xf32>
    %13 = arith.mulf %10, %12 : vector<16x32xf32>
    %14 = arith.truncf %13 : vector<16x32xf32> to vector<16x32xbf16>
    %c0_5 = arith.constant 0 : index
    %c0_6 = arith.constant 0 : index
    %15 = vector.load %arg3[%c0_5, %c0_6] : memref<32x56xbf16, #tpu.memory_space<vmem>>, vector<32x56xbf16>
    %cst_7 = arith.constant dense<0.000000e+00> : vector<16x56xf32>
    %16 = tpu.matmul %14, %15, %cst_7 {dimension_numbers = #tpu.dot_dimension_numbers<[1], [0], [0], [1], [0, 0, 1, 1], [], []>} : vector<16x32xbf16>, vector<32x56xbf16>, vector<16x56xf32> -> vector<16x56xf32>
    %17 = arith.truncf %16 : vector<16x56xf32> to vector<16x56xbf16>
    %c0_8 = arith.constant 0 : index
    %c0_9 = arith.constant 0 : index
    %18 = vector.load %arg7[%c0_8, %c0_9] : memref<16x56xbf16, #tpu.memory_space<vmem>>, vector<16x56xbf16>
    tpu.vector_store %arg7[%c0_8, %c0_9], %17 {strides = array<i32>} : memref<16x56xbf16, #tpu.memory_space<vmem>>, vector<16x56xbf16>,
    %c0_10 = arith.constant 0 : index
    %c0_11 = arith.constant 0 : index
    %19 = vector.load %arg4[%c0_10, %c0_11] : memref<32x16xbf16, #tpu.memory_space<vmem>>, vector<32x16xbf16>
    %cst_12 = arith.constant dense<0.000000e+00> : vector<16x16xf32>
    %20 = tpu.matmul %14, %19, %cst_12 {dimension_numbers = #tpu.dot_dimension_numbers<[1], [0], [0], [1], [0, 0, 1, 1], [], []>} : vector<16x32xbf16>, vector<32x16xbf16>, vector<16x16xf32> -> vector<16x16xf32>
    %21 = arith.mulf %20, %20 : vector<16x16xf32>
    %cst_13 = arith.constant dense<0.000000e+00> : vector<16xf32>
    %22 = vector.multi_reduction <add>, %21, %cst_13 [1] : vector<16x16xf32> to vector<16xf32>
    %23 = vector.shape_cast %22 : vector<16xf32> to vector<16x1xf32>
    %cst_14 = arith.constant 1.600000e+01 : f32
    %24 = vector.broadcast %cst_14 : f32 to vector<16x1xf32>
    %25 = arith.divf %23, %24 : vector<16x1xf32>
    %cst_15 = arith.constant 9.99999997E-7 : f32
    %26 = vector.broadcast %cst_15 : f32 to vector<16x1xf32>
    %27 = arith.addf %25, %26 : vector<16x1xf32>
    %28 = math.rsqrt %27 : vector<16x1xf32>
    %29 = vector.broadcast %28 : vector<16x1xf32> to vector<16x16xf32>
    %30 = arith.mulf %20, %29 : vector<16x16xf32>
    %c0_16 = arith.constant 0 : index
    %c0_17 = arith.constant 0 : index
    %31 = vector.load %arg5[%c0_16, %c0_17] : memref<1x16xf32, #tpu.memory_space<vmem>>, vector<1x16xf32>
    %32 = vector.broadcast %31 : vector<1x16xf32> to vector<16x16xf32>
    %33 = arith.mulf %30, %32 : vector<16x16xf32>
    %34 = arith.truncf %33 : vector<16x16xf32> to vector<16x16xbf16>
    %c0_18 = arith.constant 0 : index
    %c0_19 = arith.constant 0 : index
    %35 = vector.load %arg6[%c0_18, %c0_19] : memref<16x64xbf16, #tpu.memory_space<vmem>>, vector<16x64xbf16>
    %cst_20 = arith.constant dense<0.000000e+00> : vector<16x64xf32>
    %36 = tpu.matmul %34, %35, %cst_20 {dimension_numbers = #tpu.dot_dimension_numbers<[1], [0], [0], [1], [0, 0, 1, 1], [], []>} : vector<16x16xbf16>, vector<16x64xbf16>, vector<16x64xf32> -> vector<16x64xf32>
    %37 = arith.truncf %36 : vector<16x64xf32> to vector<16x64xbf16>
    %c0_21 = arith.constant 0 : index
    %c0_22 = arith.constant 0 : index
    %38 = vector.load %arg8[%c0_21, %c0_22] : memref<16x64xbf16, #tpu.memory_space<vmem>>, vector<16x64xbf16>
    tpu.vector_store %arg8[%c0_21, %c0_22], %37 {strides = array<i32>} : memref<16x64xbf16, #tpu.memory_space<vmem>>, vector<16x64xbf16>,
    return
  }
  func.func @transform_0(%arg0: i32) -> (i32, i32) {
    %c0_i32 = arith.constant 0 : i32
    %c0_i32_0 = arith.constant 0 : i32
    return %arg0, %c0_i32 : i32, i32
  }
  func.func @transform_1(%arg0: i32) -> (i32, i32) {
    %c0_i32 = arith.constant 0 : i32
    %c0_i32_0 = arith.constant 0 : i32
    %c0_i32_1 = arith.constant 0 : i32
    return %c0_i32, %c0_i32_0 : i32, i32
  }
  func.func @transform_2(%arg0: i32) -> (i32, i32) {
    %c0_i32 = arith.constant 0 : i32
    %c0_i32_0 = arith.constant 0 : i32
    %c0_i32_1 = arith.constant 0 : i32
    return %c0_i32, %c0_i32_0 : i32, i32
  }
  func.func @transform_3(%arg0: i32) -> (i32, i32) {
    %c0_i32 = arith.constant 0 : i32
    %c0_i32_0 = arith.constant 0 : i32
    %c0_i32_1 = arith.constant 0 : i32
    return %c0_i32, %c0_i32_0 : i32, i32
  }
  func.func @transform_4(%arg0: i32) -> (i32, i32) {
    %c0_i32 = arith.constant 0 : i32
    %c0_i32_0 = arith.constant 0 : i32
    %c0_i32_1 = arith.constant 0 : i32
    return %c0_i32, %c0_i32_0 : i32, i32
  }
  func.func @transform_5(%arg0: i32) -> (i32, i32) {
    %c0_i32 = arith.constant 0 : i32
    %c0_i32_0 = arith.constant 0 : i32
    %c0_i32_1 = arith.constant 0 : i32
    return %c0_i32, %c0_i32_0 : i32, i32
  }
  func.func @transform_6(%arg0: i32) -> (i32, i32) {
    %c0_i32 = arith.constant 0 : i32
    %c0_i32_0 = arith.constant 0 : i32
    return %arg0, %c0_i32 : i32, i32
  }
  func.func @transform_7(%arg0: i32) -> (i32, i32) {
    %c0_i32 = arith.constant 0 : i32
    %c0_i32_0 = arith.constant 0 : i32
    return %arg0, %c0_i32 : i32, i32
  }
}

module attributes {stable_mosaic.version = 11 : i64} {
  func.func @_mla_attn_kernel(%arg0: i32, %arg1: i32, %arg2: i32, %arg3: memref<1x2x8x16xbf16, #tpu.memory_space<vmem>>, %arg4: memref<1x2x8x8xbf16, #tpu.memory_space<vmem>>, %arg5: memref<1x2x8x16xbf16, #tpu.memory_space<vmem>>, %arg6: memref<1x1x8x8xbf16, #tpu.memory_space<vmem>>, %arg7: memref<1x2x8x16xbf16, #tpu.memory_space<vmem>>, %arg8: memref<1x8x32xf32, #tpu.memory_space<vmem>>, %arg9: memref<32x32xbf16, #tpu.memory_space<vmem>>, %arg10: memref<1x8x32xf32, #tpu.memory_space<vmem>>, %arg11: memref<2x8x1xf32, #tpu.memory_space<vmem>>, %arg12: memref<2x8x1xf32, #tpu.memory_space<vmem>>, %arg13: memref<2x8x16xf32, #tpu.memory_space<vmem>>, %arg14: memref<8x32xbf16, #tpu.memory_space<vmem>>) attributes {dimension_semantics = [#tpu.dimension_semantics<parallel>, #tpu.dimension_semantics<parallel>, #tpu.dimension_semantics<arbitrary>], iteration_bounds = array<i64: 2, 1, 1>, scalar_prefetch = 0 : i64, scratch_operands = 4 : i64, tpu.core_type = #tpu.core_type<tc>, window_params = [{transform_indices = @transform_0, window_bounds = array<i64: 1, 2, 8, 16>}, {transform_indices = @transform_1, window_bounds = array<i64: 1, 2, 8, 8>}, {transform_indices = @transform_2, window_bounds = array<i64: 1, 2, 8, 16>}, {transform_indices = @transform_3, window_bounds = array<i64: 1, 1, 8, 8>}, {transform_indices = @transform_4, window_bounds = array<i64: 1, 2, 8, 16>}, {transform_indices = @transform_5, window_bounds = array<i64: 1, 8, 32>}, {pipeline_mode = #tpu.pipeline_mode<synchronous>, transform_indices = @transform_6, window_bounds = array<i64: 32, 32>}, {transform_indices = @transform_7, window_bounds = array<i64: 1, 8, 32>}]} {
    %c0_i32 = arith.constant 0 : i32
    %0 = arith.cmpi eq, %arg2, %c0_i32 : i32
    %1 = arith.extui %0 : i1 to i32
    %c0_i32_0 = arith.constant 0 : i32
    %2 = arith.cmpi ne, %1, %c0_i32_0 : i32
    scf.if %2 {
      %cst_45 = arith.constant -1.000000e+30 : f32
      %46 = vector.broadcast %cst_45 : f32 to vector<2x8x1xf32>
      %c0_46 = arith.constant 0 : index
      %c0_47 = arith.constant 0 : index
      %c0_48 = arith.constant 0 : index
      %47 = vector.load %arg11[%c0_46, %c0_47, %c0_48] : memref<2x8x1xf32, #tpu.memory_space<vmem>>, vector<2x8x1xf32>
      tpu.vector_store %arg11[%c0_46, %c0_47, %c0_48], %46 {strides = array<i32>} : memref<2x8x1xf32, #tpu.memory_space<vmem>>, vector<2x8x1xf32>,
      %cst_49 = arith.constant 0.000000e+00 : f32
      %48 = vector.broadcast %cst_49 : f32 to vector<2x8x1xf32>
      %c0_50 = arith.constant 0 : index
      %c0_51 = arith.constant 0 : index
      %c0_52 = arith.constant 0 : index
      %49 = vector.load %arg12[%c0_50, %c0_51, %c0_52] : memref<2x8x1xf32, #tpu.memory_space<vmem>>, vector<2x8x1xf32>
      tpu.vector_store %arg12[%c0_50, %c0_51, %c0_52], %48 {strides = array<i32>} : memref<2x8x1xf32, #tpu.memory_space<vmem>>, vector<2x8x1xf32>,
      %cst_53 = arith.constant 0.000000e+00 : f32
      %50 = vector.broadcast %cst_53 : f32 to vector<2x8x16xf32>
      %c0_54 = arith.constant 0 : index
      %c0_55 = arith.constant 0 : index
      %c0_56 = arith.constant 0 : index
      %51 = vector.load %arg13[%c0_54, %c0_55, %c0_56] : memref<2x8x16xf32, #tpu.memory_space<vmem>>, vector<2x8x16xf32>
      tpu.vector_store %arg13[%c0_54, %c0_55, %c0_56], %50 {strides = array<i32>} : memref<2x8x16xf32, #tpu.memory_space<vmem>>, vector<2x8x16xf32>,
    } else {
    }
    %c0 = arith.constant 0 : index
    %c0_1 = arith.constant 0 : index
    %c0_2 = arith.constant 0 : index
    %c0_3 = arith.constant 0 : index
    %3 = vector.load %arg3[%c0, %c0_1, %c0_2, %c0_3] : memref<1x2x8x16xbf16, #tpu.memory_space<vmem>>, vector<1x2x8x16xbf16>
    %4 = vector.shape_cast %3 : vector<1x2x8x16xbf16> to vector<2x8x16xbf16>
    %c0_4 = arith.constant 0 : index
    %c0_5 = arith.constant 0 : index
    %c0_6 = arith.constant 0 : index
    %c0_7 = arith.constant 0 : index
    %5 = vector.load %arg4[%c0_4, %c0_5, %c0_6, %c0_7] : memref<1x2x8x8xbf16, #tpu.memory_space<vmem>>, vector<1x2x8x8xbf16>
    %6 = vector.shape_cast %5 : vector<1x2x8x8xbf16> to vector<2x8x8xbf16>
    %c0_8 = arith.constant 0 : index
    %c0_9 = arith.constant 0 : index
    %c0_10 = arith.constant 0 : index
    %c0_11 = arith.constant 0 : index
    %7 = vector.load %arg5[%c0_8, %c0_9, %c0_10, %c0_11] : memref<1x2x8x16xbf16, #tpu.memory_space<vmem>>, vector<1x2x8x16xbf16>
    %8 = vector.shape_cast %7 : vector<1x2x8x16xbf16> to vector<2x8x16xbf16>
    %c0_12 = arith.constant 0 : index
    %c0_13 = arith.constant 0 : index
    %c0_14 = arith.constant 0 : index
    %c0_15 = arith.constant 0 : index
    %9 = vector.load %arg6[%c0_12, %c0_13, %c0_14, %c0_15] : memref<1x1x8x8xbf16, #tpu.memory_space<vmem>>, vector<1x1x8x8xbf16>
    %10 = vector.shape_cast %9 : vector<1x1x8x8xbf16> to vector<8x8xbf16>
    %c0_16 = arith.constant 0 : index
    %c0_17 = arith.constant 0 : index
    %c0_18 = arith.constant 0 : index
    %c0_19 = arith.constant 0 : index
    %11 = vector.load %arg7[%c0_16, %c0_17, %c0_18, %c0_19] : memref<1x2x8x16xbf16, #tpu.memory_space<vmem>>, vector<1x2x8x16xbf16>
    %12 = vector.shape_cast %11 : vector<1x2x8x16xbf16> to vector<2x8x16xbf16>
    "tpu.trace_start"() <{level = 10 : i32, message = "hqd,hkd->hqk"}> : () -> ()
    %cst = arith.constant dense<0.000000e+00> : vector<2x8x8xf32>
    %13 = tpu.matmul %4, %8, %cst {dimension_numbers = #tpu.dot_dimension_numbers<[2], [2], [1], [1], [0, 0, 0, 1, 1, 1], [0], [0]>} : vector<2x8x16xbf16>, vector<2x8x16xbf16>, vector<2x8x8xf32> -> vector<2x8x8xf32>
    "tpu.trace_stop"() : () -> ()
    %14 = vector.shape_cast %6 : vector<2x8x8xbf16> to vector<16x8xbf16>
    %cst_20 = arith.constant dense<0.000000e+00> : vector<16x8xf32>
    %15 = tpu.matmul %14, %10, %cst_20 {dimension_numbers = #tpu.dot_dimension_numbers<[1], [1], [0], [0], [0, 0, 1, 0], [], []>} : vector<16x8xbf16>, vector<8x8xbf16>, vector<16x8xf32> -> vector<16x8xf32>
    %16 = vector.shape_cast %15 : vector<16x8xf32> to vector<2x8x8xf32>
    %17 = arith.addf %13, %16 : vector<2x8x8xf32>
    %cst_21 = arith.constant 0.204124153 : f32
    %18 = vector.broadcast %cst_21 : f32 to vector<2x8x8xf32>
    %19 = arith.mulf %17, %18 : vector<2x8x8xf32>
    %c0_22 = arith.constant 0 : index
    %c0_23 = arith.constant 0 : index
    %c0_24 = arith.constant 0 : index
    %20 = vector.load %arg11[%c0_22, %c0_23, %c0_24] : memref<2x8x1xf32, #tpu.memory_space<vmem>>, vector<2x8x1xf32>
    %cst_25 = arith.constant dense<0xFF800000> : vector<2x8xf32>
    %21 = vector.multi_reduction <maximumf>, %19, %cst_25 [2] : vector<2x8x8xf32> to vector<2x8xf32>
    %22 = vector.shape_cast %21 : vector<2x8xf32> to vector<2x8x1xf32>
    %23 = arith.maximumf %20, %22 : vector<2x8x1xf32>
    %24 = arith.subf %20, %23 : vector<2x8x1xf32>
    %25 = math.exp %24 : vector<2x8x1xf32>
    %26 = vector.broadcast %23 : vector<2x8x1xf32> to vector<2x8x8xf32>
    %27 = arith.subf %19, %26 : vector<2x8x8xf32>
    %28 = math.exp %27 : vector<2x8x8xf32>
    %c0_26 = arith.constant 0 : index
    %c0_27 = arith.constant 0 : index
    %c0_28 = arith.constant 0 : index
    %29 = vector.load %arg12[%c0_26, %c0_27, %c0_28] : memref<2x8x1xf32, #tpu.memory_space<vmem>>, vector<2x8x1xf32>
    %30 = arith.mulf %25, %29 : vector<2x8x1xf32>
    %cst_29 = arith.constant dense<0.000000e+00> : vector<2x8xf32>
    %31 = vector.multi_reduction <add>, %28, %cst_29 [2] : vector<2x8x8xf32> to vector<2x8xf32>
    %32 = vector.shape_cast %31 : vector<2x8xf32> to vector<2x8x1xf32>
    %33 = arith.addf %30, %32 : vector<2x8x1xf32>
    %c0_30 = arith.constant 0 : index
    %c0_31 = arith.constant 0 : index
    %c0_32 = arith.constant 0 : index
    %34 = vector.load %arg12[%c0_30, %c0_31, %c0_32] : memref<2x8x1xf32, #tpu.memory_space<vmem>>, vector<2x8x1xf32>
    tpu.vector_store %arg12[%c0_30, %c0_31, %c0_32], %33 {strides = array<i32>} : memref<2x8x1xf32, #tpu.memory_space<vmem>>, vector<2x8x1xf32>,
    %c0_33 = arith.constant 0 : index
    %c0_34 = arith.constant 0 : index
    %c0_35 = arith.constant 0 : index
    %35 = vector.load %arg13[%c0_33, %c0_34, %c0_35] : memref<2x8x16xf32, #tpu.memory_space<vmem>>, vector<2x8x16xf32>
    %36 = vector.broadcast %25 : vector<2x8x1xf32> to vector<2x8x16xf32>
    %37 = arith.mulf %36, %35 : vector<2x8x16xf32>
    %38 = arith.truncf %28 : vector<2x8x8xf32> to vector<2x8x8xbf16>
    "tpu.trace_start"() <{level = 10 : i32, message = "hqk,hkd->hqd"}> : () -> ()
    %cst_36 = arith.constant dense<0.000000e+00> : vector<2x8x16xf32>
    %39 = tpu.matmul %38, %12, %cst_36 {dimension_numbers = #tpu.dot_dimension_numbers<[2], [1], [1], [2], [0, 0, 0, 1, 1, 2], [0], [0]>} : vector<2x8x8xbf16>, vector<2x8x16xbf16>, vector<2x8x16xf32> -> vector<2x8x16xf32>
    "tpu.trace_stop"() : () -> ()
    %40 = arith.addf %37, %39 : vector<2x8x16xf32>
    %c0_37 = arith.constant 0 : index
    %c0_38 = arith.constant 0 : index
    %c0_39 = arith.constant 0 : index
    %41 = vector.load %arg13[%c0_37, %c0_38, %c0_39] : memref<2x8x16xf32, #tpu.memory_space<vmem>>, vector<2x8x16xf32>
    tpu.vector_store %arg13[%c0_37, %c0_38, %c0_39], %40 {strides = array<i32>} : memref<2x8x16xf32, #tpu.memory_space<vmem>>, vector<2x8x16xf32>,
    %c0_40 = arith.constant 0 : index
    %c0_41 = arith.constant 0 : index
    %c0_42 = arith.constant 0 : index
    %42 = vector.load %arg11[%c0_40, %c0_41, %c0_42] : memref<2x8x1xf32, #tpu.memory_space<vmem>>, vector<2x8x1xf32>
    tpu.vector_store %arg11[%c0_40, %c0_41, %c0_42], %23 {strides = array<i32>} : memref<2x8x1xf32, #tpu.memory_space<vmem>>, vector<2x8x1xf32>,
    %c0_i32_43 = arith.constant 0 : i32
    %43 = arith.cmpi eq, %arg2, %c0_i32_43 : i32
    %44 = arith.extui %43 : i1 to i32
    %c0_i32_44 = arith.constant 0 : i32
    %45 = arith.cmpi ne, %44, %c0_i32_44 : i32
    scf.if %45 {
      %c0_45 = arith.constant 0 : index
      %c0_46 = arith.constant 0 : index
      %c0_47 = arith.constant 0 : index
      %46 = vector.load %arg12[%c0_45, %c0_46, %c0_47] : memref<2x8x1xf32, #tpu.memory_space<vmem>>, vector<2x8x1xf32>
      %cst_48 = arith.constant 1.000000e-30 : f32
      %47 = vector.broadcast %cst_48 : f32 to vector<2x8x1xf32>
      %48 = arith.maximumf %46, %47 : vector<2x8x1xf32>
      %c0_49 = arith.constant 0 : index
      %c0_50 = arith.constant 0 : index
      %c0_51 = arith.constant 0 : index
      %49 = vector.load %arg13[%c0_49, %c0_50, %c0_51] : memref<2x8x16xf32, #tpu.memory_space<vmem>>, vector<2x8x16xf32>
      %50 = vector.broadcast %48 : vector<2x8x1xf32> to vector<2x8x16xf32>
      %51 = arith.divf %49, %50 : vector<2x8x16xf32>
      %52 = vector.extract_strided_slice %51 {offsets = [0, 0, 0], sizes = [1, 8, 16], strides = [1, 1, 1]} : vector<2x8x16xf32> to vector<1x8x16xf32>
      %53 = vector.shape_cast %52 : vector<1x8x16xf32> to vector<8x16xf32>
      %54 = arith.truncf %53 : vector<8x16xf32> to vector<8x16xbf16>
      %c0_52 = arith.constant 0 : index
      %c0_53 = arith.constant 0 : index
      %55 = vector.load %arg14[%c0_52, %c0_53] : memref<8x32xbf16, #tpu.memory_space<vmem>>, vector<8x16xbf16>
      tpu.vector_store %arg14[%c0_52, %c0_53], %54 {strides = array<i32>} : memref<8x32xbf16, #tpu.memory_space<vmem>>, vector<8x16xbf16>,
      %56 = vector.extract_strided_slice %51 {offsets = [1, 0, 0], sizes = [1, 8, 16], strides = [1, 1, 1]} : vector<2x8x16xf32> to vector<1x8x16xf32>
      %57 = vector.shape_cast %56 : vector<1x8x16xf32> to vector<8x16xf32>
      %58 = arith.truncf %57 : vector<8x16xf32> to vector<8x16xbf16>
      %c0_54 = arith.constant 0 : index
      %c16 = arith.constant 16 : index
      %59 = vector.load %arg14[%c0_54, %c16] : memref<8x32xbf16, #tpu.memory_space<vmem>>, vector<8x16xbf16>
      tpu.vector_store %arg14[%c0_54, %c16], %58 {strides = array<i32>} : memref<8x32xbf16, #tpu.memory_space<vmem>>, vector<8x16xbf16>,
      %c0_55 = arith.constant 0 : index
      %c0_56 = arith.constant 0 : index
      %60 = vector.load %arg14[%c0_55, %c0_56] : memref<8x32xbf16, #tpu.memory_space<vmem>>, vector<8x32xbf16>
      %c0_57 = arith.constant 0 : index
      %c0_58 = arith.constant 0 : index
      %61 = vector.load %arg9[%c0_57, %c0_58] : memref<32x32xbf16, #tpu.memory_space<vmem>>, vector<32x32xbf16>
      %cst_59 = arith.constant dense<0.000000e+00> : vector<8x32xf32>
      %62 = tpu.matmul %60, %61, %cst_59 {dimension_numbers = #tpu.dot_dimension_numbers<[1], [0], [0], [1], [0, 0, 1, 1], [], []>} : vector<8x32xbf16>, vector<32x32xbf16>, vector<8x32xf32> -> vector<8x32xf32>
      %c0_60 = arith.constant 0 : index
      %c0_61 = arith.constant 0 : index
      %c0_62 = arith.constant 0 : index
      %63 = vector.load %arg8[%c0_60, %c0_61, %c0_62] : memref<1x8x32xf32, #tpu.memory_space<vmem>>, vector<1x8x32xf32>
      %64 = vector.shape_cast %63 : vector<1x8x32xf32> to vector<8x32xf32>
      %65 = arith.addf %64, %62 : vector<8x32xf32>
      %c0_63 = arith.constant 0 : index
      %c0_64 = arith.constant 0 : index
      %c0_65 = arith.constant 0 : index
      %66 = vector.load %arg10[%c0_63, %c0_64, %c0_65] : memref<1x8x32xf32, #tpu.memory_space<vmem>>, vector<1x8x32xf32>
      %67 = vector.shape_cast %66 : vector<1x8x32xf32> to vector<8x32xf32>
      %68 = vector.shape_cast %65 : vector<8x32xf32> to vector<1x8x32xf32>
      tpu.vector_store %arg10[%c0_63, %c0_64, %c0_65], %68 {strides = array<i32>} : memref<1x8x32xf32, #tpu.memory_space<vmem>>, vector<1x8x32xf32>,
    } else {
    }
    return
  }
  func.func @transform_0(%arg0: i32, %arg1: i32, %arg2: i32) -> (i32, i32, i32, i32) {
    %c0_i32 = arith.constant 0 : i32
    %c0_i32_0 = arith.constant 0 : i32
    %c0_i32_1 = arith.constant 0 : i32
    return %arg0, %c0_i32, %arg1, %c0_i32_0 : i32, i32, i32, i32
  }
  func.func @transform_1(%arg0: i32, %arg1: i32, %arg2: i32) -> (i32, i32, i32, i32) {
    %c0_i32 = arith.constant 0 : i32
    %c0_i32_0 = arith.constant 0 : i32
    %c0_i32_1 = arith.constant 0 : i32
    return %arg0, %c0_i32, %arg1, %c0_i32_0 : i32, i32, i32, i32
  }
  func.func @transform_2(%arg0: i32, %arg1: i32, %arg2: i32) -> (i32, i32, i32, i32) {
    %c0_i32 = arith.constant 0 : i32
    %c0_i32_0 = arith.constant 0 : i32
    %c0_i32_1 = arith.constant 0 : i32
    return %arg0, %c0_i32, %arg2, %c0_i32_0 : i32, i32, i32, i32
  }
  func.func @transform_3(%arg0: i32, %arg1: i32, %arg2: i32) -> (i32, i32, i32, i32) {
    %c0_i32 = arith.constant 0 : i32
    %c0_i32_0 = arith.constant 0 : i32
    %c0_i32_1 = arith.constant 0 : i32
    return %arg0, %c0_i32, %arg2, %c0_i32_0 : i32, i32, i32, i32
  }
  func.func @transform_4(%arg0: i32, %arg1: i32, %arg2: i32) -> (i32, i32, i32, i32) {
    %c0_i32 = arith.constant 0 : i32
    %c0_i32_0 = arith.constant 0 : i32
    %c0_i32_1 = arith.constant 0 : i32
    return %arg0, %c0_i32, %arg2, %c0_i32_0 : i32, i32, i32, i32
  }
  func.func @transform_5(%arg0: i32, %arg1: i32, %arg2: i32) -> (i32, i32, i32) {
    %c0_i32 = arith.constant 0 : i32
    %c0_i32_0 = arith.constant 0 : i32
    return %arg0, %arg1, %c0_i32 : i32, i32, i32
  }
  func.func @transform_6(%arg0: i32, %arg1: i32, %arg2: i32) -> (i32, i32) {
    %c0_i32 = arith.constant 0 : i32
    %c0_i32_0 = arith.constant 0 : i32
    %c0_i32_1 = arith.constant 0 : i32
    return %c0_i32, %c0_i32_0 : i32, i32
  }
  func.func @transform_7(%arg0: i32, %arg1: i32, %arg2: i32) -> (i32, i32, i32) {
    %c0_i32 = arith.constant 0 : i32
    %c0_i32_0 = arith.constant 0 : i32
    return %arg0, %arg1, %c0_i32 : i32, i32, i32
  }
}

module attributes {stable_mosaic.version = 11 : i64} {
  func.func @_rmsnorm_kernel(%arg0: i32, %arg1: memref<16x32xf32, #tpu.memory_space<vmem>>, %arg2: memref<1x32xf32, #tpu.memory_space<vmem>>, %arg3: memref<16x32xf32, #tpu.memory_space<vmem>>) attributes {dimension_semantics = [#tpu.dimension_semantics<parallel>], iteration_bounds = array<i64: 1>, scalar_prefetch = 0 : i64, scratch_operands = 0 : i64, tpu.core_type = #tpu.core_type<tc>, window_params = [{transform_indices = @transform_0, window_bounds = array<i64: 16, 32>}, {pipeline_mode = #tpu.pipeline_mode<synchronous>, transform_indices = @transform_1, window_bounds = array<i64: 1, 32>}, {transform_indices = @transform_2, window_bounds = array<i64: 16, 32>}]} {
    %c0 = arith.constant 0 : index
    %c0_0 = arith.constant 0 : index
    %0 = vector.load %arg1[%c0, %c0_0] : memref<16x32xf32, #tpu.memory_space<vmem>>, vector<16x32xf32>
    %1 = arith.mulf %0, %0 : vector<16x32xf32>
    %cst = arith.constant dense<0.000000e+00> : vector<16xf32>
    %2 = vector.multi_reduction <add>, %1, %cst [1] : vector<16x32xf32> to vector<16xf32>
    %3 = vector.shape_cast %2 : vector<16xf32> to vector<16x1xf32>
    %cst_1 = arith.constant 3.200000e+01 : f32
    %4 = vector.broadcast %cst_1 : f32 to vector<16x1xf32>
    %5 = arith.divf %3, %4 : vector<16x1xf32>
    %c0_2 = arith.constant 0 : index
    %c0_3 = arith.constant 0 : index
    %6 = vector.load %arg2[%c0_2, %c0_3] : memref<1x32xf32, #tpu.memory_space<vmem>>, vector<1x32xf32>
    %cst_4 = arith.constant 9.99999997E-7 : f32
    %7 = vector.broadcast %cst_4 : f32 to vector<16x1xf32>
    %8 = arith.addf %5, %7 : vector<16x1xf32>
    %9 = math.rsqrt %8 : vector<16x1xf32>
    %10 = vector.broadcast %9 : vector<16x1xf32> to vector<16x32xf32>
    %11 = arith.mulf %0, %10 : vector<16x32xf32>
    %12 = vector.broadcast %6 : vector<1x32xf32> to vector<16x32xf32>
    %13 = arith.mulf %12, %11 : vector<16x32xf32>
    %c0_5 = arith.constant 0 : index
    %c0_6 = arith.constant 0 : index
    %14 = vector.load %arg3[%c0_5, %c0_6] : memref<16x32xf32, #tpu.memory_space<vmem>>, vector<16x32xf32>
    tpu.vector_store %arg3[%c0_5, %c0_6], %13 {strides = array<i32>} : memref<16x32xf32, #tpu.memory_space<vmem>>, vector<16x32xf32>,
    return
  }
  func.func @transform_0(%arg0: i32) -> (i32, i32) {
    %c0_i32 = arith.constant 0 : i32
    %c0_i32_0 = arith.constant 0 : i32
    return %arg0, %c0_i32 : i32, i32
  }
  func.func @transform_1(%arg0: i32) -> (i32, i32) {
    %c0_i32 = arith.constant 0 : i32
    %c0_i32_0 = arith.constant 0 : i32
    %c0_i32_1 = arith.constant 0 : i32
    return %c0_i32, %c0_i32_0 : i32, i32
  }
  func.func @transform_2(%arg0: i32) -> (i32, i32) {
    %c0_i32 = arith.constant 0 : i32
    %c0_i32_0 = arith.constant 0 : i32
    return %arg0, %c0_i32 : i32, i32
  }
}

</mosaic_0001>

<llo_original>
// kernel: forward.7
$region0: #{forward.7}
  #allocation0 [shape = 'u32[]', space=smem, size = 0x4, offset = 0x4, fixed_abs, tag = 'smem constant byte address 0x4 - core index']
  #allocation1 [shape = 'u32[72,128]{1,0:T(1,128)}', space=vmem, size = 0x9000, scoped, tag = 'internal scratch']
  %s0 = inlined_call_operand.vmem [shape: f32[16,32], index: 0, kind: input, shape index: {}]
  %s1 = inlined_call_operand.vmem [shape: f32[1,32], index: 1, kind: input, shape index: {}]
  %s2 = inlined_call_operand.vmem [shape: bf16[32,56], index: 2, kind: input, shape index: {}]
  %s3 = inlined_call_operand.vmem [shape: bf16[32,16], index: 3, kind: input, shape index: {}]
  %s4 = inlined_call_operand.vmem [shape: f32[1,16], index: 4, kind: input, shape index: {}]
  %s5 = inlined_call_operand.hbm [shape: bf16[16,64], index: 5, kind: input, shape index: {}]
  %s6 = inlined_call_operand.vmem [shape: bf16[16,56], index: 6, kind: output, shape index: {0}]
  %s7 = inlined_call_operand.vmem [shape: bf16[16,64], index: 7, kind: output, shape index: {1}]
  %8 = xla_tuple %s6, %s7
  %s9 = sld [smem:[#allocation0]]
  $region46: #{forward.7} parent=0
    _
  %s11 = ssub.s32 1, %s9
  %s12 = scalar_select 0, %s11, %s9
  $region1: #{forward.7} parent=0
    #allocation2 [shape = 'u8[4096]{0}', space=vmem, size = 0x1000, scoped, tag = 'input window, operand 5, single buffered']
    #allocation3 [shape = 's32[1]{0}', space=sflag, size = 0x4, scoped, tag = 'scoped memory for forward.7']
    %13 = vsyncpa [#allocation3], 0
    // Predicated region
    $region2: #{forward.7} parent=1 // pred_check
      _
    $region3: #{forward.7} parent=1 // pred_check_branch
      %15 = sbr.rel (0) target = $region5
    $region4: #{forward.7} parent=1 // pred_region
      _
    $region5: #{forward.7} parent=1 // pred_fallthru
      _
    // Predicated region
    $region6: #{forward.7} parent=1 // pred_check
      _
    $region7: #{forward.7} parent=1 // pred_check_branch
      %17 = sbr.rel (0) target = $region9
    $region8: #{forward.7} parent=1 // pred_region
      _
    $region9: #{forward.7} parent=1 // pred_fallthru
      _
    // Predicated region
    $region10: #{forward.7} parent=1 // pred_check
      _
    $region11: #{forward.7} parent=1 // pred_check_branch
      %19 = sbr.rel (0) target = $region13
    $region12: #{forward.7} parent=1 // pred_region
      _
    $region13: #{forward.7} parent=1 // pred_fallthru
      _
    // Predicated region
    $region14: #{forward.7} parent=1 // pred_check
      _
    $region15: #{forward.7} parent=1 // pred_check_branch
      %21 = sbr.rel (0) target = $region17
    $region16: #{forward.7} parent=1 // pred_region
      _
    $region17: #{forward.7} parent=1 // pred_fallthru
      _
    // Predicated region
    $region18: #{forward.7} parent=1 // pred_check
      _
    $region19: #{forward.7} parent=1 // pred_check_branch
      %23 = sbr.rel (0) target = $region21
    $region20: #{forward.7} parent=1 // pred_region
      _
    $region21: #{forward.7} parent=1 // pred_fallthru
      _
    // Predicated region
    $region22: #{forward.7} parent=1 // pred_check
      _
    $region23: #{forward.7} parent=1 // pred_check_branch
      %25 = sbr.rel (0) target = $region25
    $region24: #{forward.7} parent=1 // pred_region
      %27 = vsyncadd [#allocation3], 0
      %s28 = sshll.u32 %s5, 4
      %s29 = int_to_ptr.hbm [resolvable:$true] %s28
      %s30 = sshll.u32 [#allocation2], 4
      %s31 = int_to_ptr.vmem [resolvable:$true] %s30
      %36 = dma.hbm_to_vmem [thread:$0]  %s29, 128, %s31, [#allocation3], 64, 64, 4
    $region25: #{forward.7} parent=1 // pred_fallthru
      _
    // Predicated region
    $region26: #{forward.7} parent=1 // pred_check
      _
    $region27: #{forward.7} parent=1 // pred_check_branch
      %38 = sbr.rel (0) target = $region29
    $region28: #{forward.7} parent=1 // pred_region
      %40 = dma.done [#allocation3], 128
    $region29: #{forward.7} parent=1 // pred_fallthru
      _
    %v42 = vld [vmem:[%s0] sm:$0xff]
    %v43 = vld [vmem:[%s0 + $0x8] sm:$0xff]
    %v44 = vmul.f32 %v42, %v42
    %v45 = vmul.f32 %v43, %v43
    %vm46 = vcmask 261120
    %v47 = vsel %vm46, %v44, 0.0
    %48 = vadd.xlane.f32.xlu0 %v47
    %v49 = vpop.xlane.xlu0 %48
    %v50 = vsel %vm46, %v45, 0.0
    %51 = vadd.xlane.f32.xlu0 %v50
    %v52 = vpop.xlane.xlu0 %51
    %v53 = vrcp.pop 32.0
    %v54 = vmul.f32 32.0, %v53
    %v55 = vsub.f32 1.0, %v54
    %v56 = vmul.f32 %v53, %v55
    %v57 = vadd.f32 %v53, %v56
    %vm58 = vweird.f32 %v53
    %v59 = vsel %vm58, %v53, %v57
    %v60 = vmul.f32 %v49, %v59
    %v61 = vmul.f32 %v52, %v59
    %v62 = vadd.f32 %v60, 1e-06
    %v63 = vadd.f32 %v61, 1e-06
    %v64 = vrsqrt.pop %v62
    %v65 = vmul.f32 %v64, %v62
    %v66 = vmul.f32 %v65, %v64
    %v67 = vmul.f32 0.5, %v66
    %v68 = vsub.f32 1.5, %v67
    %v69 = vmul.f32 %v64, %v68
    %vm70 = vweird.f32 %v62
    %vm71 = vweird.f32 %v64
    %vm72 = vmor %vm70, %vm71
    %v73 = vsel %vm72, %v64, %v69
    %v74 = vrsqrt.pop %v63
    %v75 = vmul.f32 %v74, %v63
    %v76 = vmul.f32 %v75, %v74
    %v77 = vmul.f32 0.5, %v76
    %v78 = vsub.f32 1.5, %v77
    %v79 = vmul.f32 %v74, %v78
    %vm80 = vweird.f32 %v63
    %vm81 = vweird.f32 %v74
    %vm82 = vmor %vm80, %vm81
    %v83 = vsel %vm82, %v74, %v79
    %v84 = vmul.f32 %v42, %v73
    %v85 = vmul.f32 %v43, %v83
    %v86 = vld [vmem:[%s1] sm:$0x1]
    %v88 = vperm.slane %v86, 0
    %v90 = vmul.f32 %v84, %v88
    %v91 = vmul.f32 %v85, %v88
    %v92 = vpack.c.bf16 %v91, %v90
    %v93 = vld [vmem:[%s2] sm:$0xf]
    %v94 = vld [vmem:[%s2 + $0x4] sm:$0xf]
    %v95 = vld [vmem:[%s2 + $0x8] sm:$0xf]
    %v96 = vld [vmem:[%s2 + $0xc] sm:$0xf]
    %v101 = vunpack.c.l.b16 %v93
    %v102 = vunpack.c.l.b16 %v94
    %v103 = vunpack.c.l.b16 %v95
    %v104 = vunpack.c.l.b16 %v96
    %v105 = vpack.c.b16 %v102, %v101
    %v106 = vpack.c.b16 %v104, %v103
    %v110 = vsel %vm46, %v92, 0
    %112 = vmatpush.bf16.msra.mxu0 0
    %113 = vmatpush.bf16.msra.mxu0 0
    %114 = vmatpush.bf16.msra.mxu0 0
    %115 = vmatpush.bf16.msra.mxu0 0
    %116 = vmatpush.bf16.msra.mxu0 0
    %117 = vmatpush.bf16.msra.mxu0 0
    %118 = vmatpush.bf16.msra.mxu0 %v106
    %119 = vmatpush.bf16.msra.mxu0 %v105
    %120 = vmatmul.bf16.gmra.mxu0 %v110
    %v121 = vpop.f32.mrf.mxu0
    %v122 = vadd.f32 0.0, %v121
    %v123 = vpop.f32.mrf.mxu0
    %v124 = vadd.f32 0.0, %v123
    %125 = vdwg.mxu0
    %v126 = vpack.c.bf16 %v122, %v122
    %v127 = vpack.c.bf16 %v124, %v124
    %vm128 = vcmask 453632
    %129 = vst.msk [vmem:[%s6] sm:$0xf] %vm128, %v126
    %130 = vst.msk [vmem:[%s6 + $0x4] sm:$0xf] %vm128, %v127
    %v131 = vld [vmem:[%s3] sm:$0xf]
    %v132 = vld [vmem:[%s3 + $0x4] sm:$0xf]
    %v133 = vld [vmem:[%s3 + $0x8] sm:$0xf]
    %v134 = vld [vmem:[%s3 + $0xc] sm:$0xf]
    %v139 = vunpack.c.l.b16 %v131
    %v140 = vunpack.c.l.b16 %v132
    %v141 = vunpack.c.l.b16 %v133
    %v142 = vunpack.c.l.b16 %v134
    %v143 = vpack.c.b16 %v140, %v139
    %v144 = vpack.c.b16 %v142, %v141
    %147 = vmatpush.bf16.msra.mxu0 0
    %148 = vmatpush.bf16.msra.mxu0 0
    %149 = vmatpush.bf16.msra.mxu0 0
    %150 = vmatpush.bf16.msra.mxu0 0
    %151 = vmatpush.bf16.msra.mxu0 0
    %152 = vmatpush.bf16.msra.mxu0 0
    %153 = vmatpush.bf16.msra.mxu0 %v144
    %154 = vmatpush.bf16.msra.mxu0 %v143
    %155 = vmatmul.bf16.gmra.mxu0 %v110
    %v156 = vpop.f32.mrf.mxu0
    %v157 = vadd.f32 0.0, %v156
    %v158 = vpop.f32.mrf.mxu0
    %v159 = vadd.f32 0.0, %v158
    %160 = vdwg.mxu0
    %v161 = vmul.f32 %v157, %v157
    %v162 = vmul.f32 %v159, %v159
    %vm163 = vcmask 130048
    %v164 = vsel %vm163, %v161, 0.0
    %165 = vadd.xlane.f32.xlu0 %v164
    %v166 = vpop.xlane.xlu0 %165
    %v167 = vsel %vm163, %v162, 0.0
    %168 = vadd.xlane.f32.xlu0 %v167
    %v169 = vpop.xlane.xlu0 %168
    %v170 = vrcp.pop 16.0
    %v171 = vmul.f32 16.0, %v170
    %v172 = vsub.f32 1.0, %v171
    %v173 = vmul.f32 %v170, %v172
    %v174 = vadd.f32 %v170, %v173
    %vm175 = vweird.f32 %v170
    %v176 = vsel %vm175, %v170, %v174
    %v177 = vmul.f32 %v166, %v176
    %v178 = vmul.f32 %v169, %v176
    %v179 = vadd.f32 %v177, 1e-06
    %v180 = vadd.f32 %v178, 1e-06
    %v181 = vrsqrt.pop %v179
    %v182 = vmul.f32 %v181, %v179
    %v183 = vmul.f32 %v182, %v181
    %v184 = vmul.f32 0.5, %v183
    %v185 = vsub.f32 1.5, %v184
    %v186 = vmul.f32 %v181, %v185
    %vm187 = vweird.f32 %v179
    %vm188 = vweird.f32 %v181
    %vm189 = vmor %vm187, %vm188
    %v190 = vsel %vm189, %v181, %v186
    %v191 = vrsqrt.pop %v180
    %v192 = vmul.f32 %v191, %v180
    %v193 = vmul.f32 %v192, %v191
    %v194 = vmul.f32 0.5, %v193
    %v195 = vsub.f32 1.5, %v194
    %v196 = vmul.f32 %v191, %v195
    %vm197 = vweird.f32 %v180
    %vm198 = vweird.f32 %v191
    %vm199 = vmor %vm197, %vm198
    %v200 = vsel %vm199, %v191, %v196
    %v201 = vmul.f32 %v157, %v190
    %v202 = vmul.f32 %v159, %v200
    %v203 = vld [vmem:[%s4] sm:$0x1]
    %v205 = vperm.slane %v203, 0
    %v207 = vmul.f32 %v201, %v205
    %v208 = vmul.f32 %v202, %v205
    %v209 = vpack.c.bf16 %v208, %v207
    %v210 = vld [vmem:[#allocation2] sm:$0xf]
    %v211 = vld [vmem:[#allocation2 + $0x4] sm:$0xf]
    %v214 = vunpack.c.l.b16 %v210
    %v215 = vunpack.c.l.b16 %v211
    %v216 = vpack.c.b16 %v215, %v214
    %v219 = vsel %vm163, %v209, 0
    %221 = vmatpush.bf16.msra.mxu0 0
    %222 = vmatpush.bf16.msra.mxu0 0
    %223 = vmatpush.bf16.msra.mxu0 0
    %224 = vmatpush.bf16.msra.mxu0 0
    %225 = vmatpush.bf16.msra.mxu0 0
    %226 = vmatpush.bf16.msra.mxu0 0
    %227 = vmatpush.bf16.msra.mxu0 0
    %228 = vmatpush.bf16.msra.mxu0 %v216
    %229 = vmatmul.bf16.gmra.mxu0 %v219
    %v230 = vpop.f32.mrf.mxu0
    %v231 = vadd.f32 0.0, %v230
    %v232 = vpop.f32.mrf.mxu0
    %v233 = vadd.f32 0.0, %v232
    %234 = vdwg.mxu0
    %v235 = vpack.c.bf16 %v231, %v231
    %v236 = vpack.c.bf16 %v233, %v233
    %vm237 = vcmask 519168
    %238 = vst.msk [vmem:[%s7] sm:$0xf] %vm237, %v235
    %239 = vst.msk [vmem:[%s7 + $0x4] sm:$0xf] %vm237, %v236
    // Predicated region
    $region30: #{forward.7} parent=1 // pred_check
      _
    $region31: #{forward.7} parent=1 // pred_check_branch
      %241 = sbr.rel (0) target = $region33
    $region32: #{forward.7} parent=1 // pred_region
      _
    $region33: #{forward.7} parent=1 // pred_fallthru
      _
    // Predicated region
    $region34: #{forward.7} parent=1 // pred_check
      _
    $region35: #{forward.7} parent=1 // pred_check_branch
      %243 = sbr.rel (0) target = $region37
    $region36: #{forward.7} parent=1 // pred_region
      _
    $region37: #{forward.7} parent=1 // pred_fallthru
      _
    // Predicated region
    $region38: #{forward.7} parent=1 // pred_check
      _
    $region39: #{forward.7} parent=1 // pred_check_branch
      %245 = sbr.rel (0) target = $region41
    $region40: #{forward.7} parent=1 // pred_region
      _
    $region41: #{forward.7} parent=1 // pred_fallthru
      _
    // Predicated region
    $region42: #{forward.7} parent=1 // pred_check
      _
    $region43: #{forward.7} parent=1 // pred_check_branch
      %247 = sbr.rel (0) target = $region45
    $region44: #{forward.7} parent=1 // pred_region
      _
    $region45: #{forward.7} parent=1 // pred_fallthru
      _
    %248 = vsyncpa [#allocation3], 1

// kernel: forward.10
$region0: #{forward.10}
  #allocation0 [shape = 'u32[]', space=smem, size = 0x4, offset = 0x4, fixed_abs, tag = 'smem constant byte address 0x4 - core index']
  #allocation1 [shape = 'u32[72,128]{1,0:T(1,128)}', space=vmem, size = 0x9000, scoped, tag = 'internal scratch']
  %s0 = inlined_call_operand.vmem [shape: f32[16,32], index: 0, kind: input, shape index: {}]
  %s1 = inlined_call_operand.vmem [shape: f32[1,32], index: 1, kind: input, shape index: {}]
  %s2 = inlined_call_operand.vmem [shape: bf16[32,56], index: 2, kind: input, shape index: {}]
  %s3 = inlined_call_operand.vmem [shape: bf16[32,16], index: 3, kind: input, shape index: {}]
  %s4 = inlined_call_operand.vmem [shape: f32[1,16], index: 4, kind: input, shape index: {}]
  %s5 = inlined_call_operand.vmem [shape: bf16[16,64], index: 5, kind: input, shape index: {}]
  %s6 = inlined_call_operand.vmem [shape: bf16[16,56], index: 6, kind: output, shape index: {0}]
  %s7 = inlined_call_operand.vmem [shape: bf16[16,64], index: 7, kind: output, shape index: {1}]
  %8 = xla_tuple %s6, %s7
  %s9 = sld [smem:[#allocation0]]
  $region42: #{forward.10} parent=0
    _
  %s11 = ssub.s32 1, %s9
  %s12 = scalar_select 0, %s11, %s9
  // Predicated region
  $region2: #{forward.10} parent=0 // pred_check
    _
  $region3: #{forward.10} parent=0 // pred_check_branch
    %14 = sbr.rel (0) target = $region5
  $region4: #{forward.10} parent=0 // pred_region
    _
  $region5: #{forward.10} parent=0 // pred_fallthru
    _
  // Predicated region
  $region6: #{forward.10} parent=0 // pred_check
    _
  $region7: #{forward.10} parent=0 // pred_check_branch
    %16 = sbr.rel (0) target = $region9
  $region8: #{forward.10} parent=0 // pred_region
    _
  $region9: #{forward.10} parent=0 // pred_fallthru
    _
  // Predicated region
  $region10: #{forward.10} parent=0 // pred_check
    _
  $region11: #{forward.10} parent=0 // pred_check_branch
    %18 = sbr.rel (0) target = $region13
  $region12: #{forward.10} parent=0 // pred_region
    _
  $region13: #{forward.10} parent=0 // pred_fallthru
    _
  // Predicated region
  $region14: #{forward.10} parent=0 // pred_check
    _
  $region15: #{forward.10} parent=0 // pred_check_branch
    %20 = sbr.rel (0) target = $region17
  $region16: #{forward.10} parent=0 // pred_region
    _
  $region17: #{forward.10} parent=0 // pred_fallthru
    _
  // Predicated region
  $region18: #{forward.10} parent=0 // pred_check
    _
  $region19: #{forward.10} parent=0 // pred_check_branch
    %22 = sbr.rel (0) target = $region21
  $region20: #{forward.10} parent=0 // pred_region
    _
  $region21: #{forward.10} parent=0 // pred_fallthru
    _
  // Predicated region
  $region22: #{forward.10} parent=0 // pred_check
    _
  $region23: #{forward.10} parent=0 // pred_check_branch
    %24 = sbr.rel (0) target = $region25
  $region24: #{forward.10} parent=0 // pred_region
    _
  $region25: #{forward.10} parent=0 // pred_fallthru
    _
  %v26 = vld [vmem:[%s0] sm:$0xff]
  %v27 = vld [vmem:[%s0 + $0x8] sm:$0xff]
  %v28 = vmul.f32 %v26, %v26
  %v29 = vmul.f32 %v27, %v27
  %vm30 = vcmask 261120
  %v31 = vsel %vm30, %v28, 0.0
  %32 = vadd.xlane.f32.xlu0 %v31
  %v33 = vpop.xlane.xlu0 %32
  %v34 = vsel %vm30, %v29, 0.0
  %35 = vadd.xlane.f32.xlu0 %v34
  %v36 = vpop.xlane.xlu0 %35
  %v37 = vrcp.pop 32.0
  %v38 = vmul.f32 32.0, %v37
  %v39 = vsub.f32 1.0, %v38
  %v40 = vmul.f32 %v37, %v39
  %v41 = vadd.f32 %v37, %v40
  %vm42 = vweird.f32 %v37
  %v43 = vsel %vm42, %v37, %v41
  %v44 = vmul.f32 %v33, %v43
  %v45 = vmul.f32 %v36, %v43
  %v46 = vadd.f32 %v44, 1e-06
  %v47 = vadd.f32 %v45, 1e-06
  %v48 = vrsqrt.pop %v46
  %v49 = vmul.f32 %v48, %v46
  %v50 = vmul.f32 %v49, %v48
  %v51 = vmul.f32 0.5, %v50
  %v52 = vsub.f32 1.5, %v51
  %v53 = vmul.f32 %v48, %v52
  %vm54 = vweird.f32 %v46
  %vm55 = vweird.f32 %v48
  %vm56 = vmor %vm54, %vm55
  %v57 = vsel %vm56, %v48, %v53
  %v58 = vrsqrt.pop %v47
  %v59 = vmul.f32 %v58, %v47
  %v60 = vmul.f32 %v59, %v58
  %v61 = vmul.f32 0.5, %v60
  %v62 = vsub.f32 1.5, %v61
  %v63 = vmul.f32 %v58, %v62
  %vm64 = vweird.f32 %v47
  %vm65 = vweird.f32 %v58
  %vm66 = vmor %vm64, %vm65
  %v67 = vsel %vm66, %v58, %v63
  %v68 = vmul.f32 %v26, %v57
  %v69 = vmul.f32 %v27, %v67
  %v70 = vld [vmem:[%s1] sm:$0x1]
  %v72 = vperm.slane %v70, 0
  %v74 = vmul.f32 %v68, %v72
  %v75 = vmul.f32 %v69, %v72
  %v76 = vpack.c.bf16 %v75, %v74
  %v77 = vld [vmem:[%s2] sm:$0xf]
  %v78 = vld [vmem:[%s2 + $0x4] sm:$0xf]
  %v79 = vld [vmem:[%s2 + $0x8] sm:$0xf]
  %v80 = vld [vmem:[%s2 + $0xc] sm:$0xf]
  %v85 = vunpack.c.l.b16 %v77
  %v86 = vunpack.c.l.b16 %v78
  %v87 = vunpack.c.l.b16 %v79
  %v88 = vunpack.c.l.b16 %v80
  %v89 = vpack.c.b16 %v86, %v85
  %v90 = vpack.c.b16 %v88, %v87
  %v94 = vsel %vm30, %v76, 0
  %96 = vmatpush.bf16.msra.mxu0 0
  %97 = vmatpush.bf16.msra.mxu0 0
  %98 = vmatpush.bf16.msra.mxu0 0
  %99 = vmatpush.bf16.msra.mxu0 0
  %100 = vmatpush.bf16.msra.mxu0 0
  %101 = vmatpush.bf16.msra.mxu0 0
  %102 = vmatpush.bf16.msra.mxu0 %v90
  %103 = vmatpush.bf16.msra.mxu0 %v89
  %104 = vmatmul.bf16.gmra.mxu0 %v94
  %v105 = vpop.f32.mrf.mxu0
  %v106 = vadd.f32 0.0, %v105
  %v107 = vpop.f32.mrf.mxu0
  %v108 = vadd.f32 0.0, %v107
  %109 = vdwg.mxu0
  %v110 = vpack.c.bf16 %v106, %v106
  %v111 = vpack.c.bf16 %v108, %v108
  %vm112 = vcmask 453632
  %113 = vst.msk [vmem:[%s6] sm:$0xf] %vm112, %v110
  %114 = vst.msk [vmem:[%s6 + $0x4] sm:$0xf] %vm112, %v111
  %v115 = vld [vmem:[%s3] sm:$0xf]
  %v116 = vld [vmem:[%s3 + $0x4] sm:$0xf]
  %v117 = vld [vmem:[%s3 + $0x8] sm:$0xf]
  %v118 = vld [vmem:[%s3 + $0xc] sm:$0xf]
  %v123 = vunpack.c.l.b16 %v115
  %v124 = vunpack.c.l.b16 %v116
  %v125 = vunpack.c.l.b16 %v117
  %v126 = vunpack.c.l.b16 %v118
  %v127 = vpack.c.b16 %v124, %v123
  %v128 = vpack.c.b16 %v126, %v125
  %131 = vmatpush.bf16.msra.mxu0 0
  %132 = vmatpush.bf16.msra.mxu0 0
  %133 = vmatpush.bf16.msra.mxu0 0
  %134 = vmatpush.bf16.msra.mxu0 0
  %135 = vmatpush.bf16.msra.mxu0 0
  %136 = vmatpush.bf16.msra.mxu0 0
  %137 = vmatpush.bf16.msra.mxu0 %v128
  %138 = vmatpush.bf16.msra.mxu0 %v127
  %139 = vmatmul.bf16.gmra.mxu0 %v94
  %v140 = vpop.f32.mrf.mxu0
  %v141 = vadd.f32 0.0, %v140
  %v142 = vpop.f32.mrf.mxu0
  %v143 = vadd.f32 0.0, %v142
  %144 = vdwg.mxu0
  %v145 = vmul.f32 %v141, %v141
  %v146 = vmul.f32 %v143, %v143
  %vm147 = vcmask 130048
  %v148 = vsel %vm147, %v145, 0.0
  %149 = vadd.xlane.f32.xlu0 %v148
  %v150 = vpop.xlane.xlu0 %149
  %v151 = vsel %vm147, %v146, 0.0
  %152 = vadd.xlane.f32.xlu0 %v151
  %v153 = vpop.xlane.xlu0 %152
  %v154 = vrcp.pop 16.0
  %v155 = vmul.f32 16.0, %v154
  %v156 = vsub.f32 1.0, %v155
  %v157 = vmul.f32 %v154, %v156
  %v158 = vadd.f32 %v154, %v157
  %vm159 = vweird.f32 %v154
  %v160 = vsel %vm159, %v154, %v158
  %v161 = vmul.f32 %v150, %v160
  %v162 = vmul.f32 %v153, %v160
  %v163 = vadd.f32 %v161, 1e-06
  %v164 = vadd.f32 %v162, 1e-06
  %v165 = vrsqrt.pop %v163
  %v166 = vmul.f32 %v165, %v163
  %v167 = vmul.f32 %v166, %v165
  %v168 = vmul.f32 0.5, %v167
  %v169 = vsub.f32 1.5, %v168
  %v170 = vmul.f32 %v165, %v169
  %vm171 = vweird.f32 %v163
  %vm172 = vweird.f32 %v165
  %vm173 = vmor %vm171, %vm172
  %v174 = vsel %vm173, %v165, %v170
  %v175 = vrsqrt.pop %v164
  %v176 = vmul.f32 %v175, %v164
  %v177 = vmul.f32 %v176, %v175
  %v178 = vmul.f32 0.5, %v177
  %v179 = vsub.f32 1.5, %v178
  %v180 = vmul.f32 %v175, %v179
  %vm181 = vweird.f32 %v164
  %vm182 = vweird.f32 %v175
  %vm183 = vmor %vm181, %vm182
  %v184 = vsel %vm183, %v175, %v180
  %v185 = vmul.f32 %v141, %v174
  %v186 = vmul.f32 %v143, %v184
  %v187 = vld [vmem:[%s4] sm:$0x1]
  %v189 = vperm.slane %v187, 0
  %v191 = vmul.f32 %v185, %v189
  %v192 = vmul.f32 %v186, %v189
  %v193 = vpack.c.bf16 %v192, %v191
  %v194 = vld [vmem:[%s5] sm:$0xf]
  %v195 = vld [vmem:[%s5 + $0x4] sm:$0xf]
  %v198 = vunpack.c.l.b16 %v194
  %v199 = vunpack.c.l.b16 %v195
  %v200 = vpack.c.b16 %v199, %v198
  %v203 = vsel %vm147, %v193, 0
  %205 = vmatpush.bf16.msra.mxu0 0
  %206 = vmatpush.bf16.msra.mxu0 0
  %207 = vmatpush.bf16.msra.mxu0 0
  %208 = vmatpush.bf16.msra.mxu0 0
  %209 = vmatpush.bf16.msra.mxu0 0
  %210 = vmatpush.bf16.msra.mxu0 0
  %211 = vmatpush.bf16.msra.mxu0 0
  %212 = vmatpush.bf16.msra.mxu0 %v200
  %213 = vmatmul.bf16.gmra.mxu0 %v203
  %v214 = vpop.f32.mrf.mxu0
  %v215 = vadd.f32 0.0, %v214
  %v216 = vpop.f32.mrf.mxu0
  %v217 = vadd.f32 0.0, %v216
  %218 = vdwg.mxu0
  %v219 = vpack.c.bf16 %v215, %v215
  %v220 = vpack.c.bf16 %v217, %v217
  %vm221 = vcmask 519168
  %222 = vst.msk [vmem:[%s7] sm:$0xf] %vm221, %v219
  %223 = vst.msk [vmem:[%s7 + $0x4] sm:$0xf] %vm221, %v220
  // Predicated region
  $region26: #{forward.10} parent=0 // pred_check
    _
  $region27: #{forward.10} parent=0 // pred_check_branch
    %225 = sbr.rel (0) target = $region29
  $region28: #{forward.10} parent=0 // pred_region
    _
  $region29: #{forward.10} parent=0 // pred_fallthru
    _
  // Predicated region
  $region30: #{forward.10} parent=0 // pred_check
    _
  $region31: #{forward.10} parent=0 // pred_check_branch
    %227 = sbr.rel (0) target = $region33
  $region32: #{forward.10} parent=0 // pred_region
    _
  $region33: #{forward.10} parent=0 // pred_fallthru
    _
  // Predicated region
  $region34: #{forward.10} parent=0 // pred_check
    _
  $region35: #{forward.10} parent=0 // pred_check_branch
    %229 = sbr.rel (0) target = $region37
  $region36: #{forward.10} parent=0 // pred_region
    _
  $region37: #{forward.10} parent=0 // pred_fallthru
    _
  // Predicated region
  $region38: #{forward.10} parent=0 // pred_check
    _
  $region39: #{forward.10} parent=0 // pred_check_branch
    %231 = sbr.rel (0) target = $region41
  $region40: #{forward.10} parent=0 // pred_region
    _
  $region41: #{forward.10} parent=0 // pred_fallthru
    _

// kernel: forward.9
$region0: #{forward.9}
  #allocation0 [shape = 'u32[]', space=smem, size = 0x4, offset = 0x4, fixed_abs, tag = 'smem constant byte address 0x4 - core index']
  #allocation1 [shape = 'u32[72,128]{1,0:T(1,128)}', space=vmem, size = 0x9000, scoped, tag = 'internal scratch']
  #allocation2 [shape = 'bf16[16,32]{1,0:T(8,128)(2,1)}', space=vmem, size = 0x1000, scoped, tag = 'scratch operand']
  #allocation3 [shape = 'f32[16,32]{1,0:T(8,128)}', space=vmem, size = 0x2000, scoped, tag = 'scratch operand']
  %s0 = inlined_call_operand.vmem [shape: f32[16,32], index: 0, kind: input, shape index: {}]
  %s1 = inlined_call_operand.vmem [shape: f32[1,32], index: 1, kind: input, shape index: {}]
  %s2 = inlined_call_operand.vmem [shape: bf16[32,64], index: 2, kind: input, shape index: {}]
  %s3 = inlined_call_operand.vmem [shape: bf16[32,64], index: 3, kind: input, shape index: {}]
  %s4 = inlined_call_operand.vmem [shape: bf16[64,32], index: 4, kind: input, shape index: {}]
  %s5 = inlined_call_operand.vmem [shape: f32[16,32], index: 5, kind: output, shape index: {}]
  %s6 = sld [smem:[#allocation0]]
  $region38: #{forward.9} parent=0
    _
  %s8 = ssub.s32 1, %s6
  %s9 = scalar_select 0, %s8, %s6
  // Predicated region
  $region2: #{forward.9} parent=0 // pred_check
    _
  $region3: #{forward.9} parent=0 // pred_check_branch
    %11 = sbr.rel (0) target = $region5
  $region4: #{forward.9} parent=0 // pred_region
    _
  $region5: #{forward.9} parent=0 // pred_fallthru
    _
  // Predicated region
  $region6: #{forward.9} parent=0 // pred_check
    _
  $region7: #{forward.9} parent=0 // pred_check_branch
    %13 = sbr.rel (0) target = $region9
  $region8: #{forward.9} parent=0 // pred_region
    _
  $region9: #{forward.9} parent=0 // pred_fallthru
    _
  // Predicated region
  $region10: #{forward.9} parent=0 // pred_check
    _
  $region11: #{forward.9} parent=0 // pred_check_branch
    %15 = sbr.rel (0) target = $region13
  $region12: #{forward.9} parent=0 // pred_region
    _
  $region13: #{forward.9} parent=0 // pred_fallthru
    _
  // Predicated region
  $region14: #{forward.9} parent=0 // pred_check
    _
  $region15: #{forward.9} parent=0 // pred_check_branch
    %17 = sbr.rel (0) target = $region17
  $region16: #{forward.9} parent=0 // pred_region
    _
  $region17: #{forward.9} parent=0 // pred_fallthru
    _
  // Predicated region
  $region18: #{forward.9} parent=0 // pred_check
    _
  $region19: #{forward.9} parent=0 // pred_check_branch
    %19 = sbr.rel (0) target = $region21
  $region20: #{forward.9} parent=0 // pred_region
    _
  $region21: #{forward.9} parent=0 // pred_fallthru
    _
  %p21 = scmp.eq.s32.totalorder 0, 0
  // Predicated region
  $region22: #{forward.9} parent=0 // pred_check
    %p22 = pneg %p21
  $region23: #{forward.9} parent=0 // pred_check_branch
    %24 = sbr.rel (%p22) target = $region25
  $region24: #{forward.9} parent=0 // pred_region
    %v25 = vld [vmem:[%s0] sm:$0xff]
    %v26 = vld [vmem:[%s0 + $0x8] sm:$0xff]
    %v27 = vmul.f32 %v25, %v25
    %v28 = vmul.f32 %v26, %v26
    %vm29 = vcmask 261120
    %v30 = vsel %vm29, %v27, 0.0
    %31 = vadd.xlane.f32.xlu0 %v30
    %v32 = vpop.xlane.xlu0 %31
    %v33 = vsel %vm29, %v28, 0.0
    %34 = vadd.xlane.f32.xlu0 %v33
    %v35 = vpop.xlane.xlu0 %34
    %v36 = vrcp.pop 32.0
    %v37 = vmul.f32 32.0, %v36
    %v38 = vsub.f32 1.0, %v37
    %v39 = vmul.f32 %v36, %v38
    %v40 = vadd.f32 %v36, %v39
    %vm41 = vweird.f32 %v36
    %v42 = vsel %vm41, %v36, %v40
    %v43 = vmul.f32 %v32, %v42
    %v44 = vmul.f32 %v35, %v42
    %v45 = vadd.f32 %v43, 1e-06
    %v46 = vadd.f32 %v44, 1e-06
    %v47 = vrsqrt.pop %v45
    %v48 = vmul.f32 %v47, %v45
    %v49 = vmul.f32 %v48, %v47
    %v50 = vmul.f32 0.5, %v49
    %v51 = vsub.f32 1.5, %v50
    %v52 = vmul.f32 %v47, %v51
    %vm53 = vweird.f32 %v45
    %vm54 = vweird.f32 %v47
    %vm55 = vmor %vm53, %vm54
    %v56 = vsel %vm55, %v47, %v52
    %v57 = vrsqrt.pop %v46
    %v58 = vmul.f32 %v57, %v46
    %v59 = vmul.f32 %v58, %v57
    %v60 = vmul.f32 0.5, %v59
    %v61 = vsub.f32 1.5, %v60
    %v62 = vmul.f32 %v57, %v61
    %vm63 = vweird.f32 %v46
    %vm64 = vweird.f32 %v57
    %vm65 = vmor %vm63, %vm64
    %v66 = vsel %vm65, %v57, %v62
    %v67 = vmul.f32 %v25, %v56
    %v68 = vmul.f32 %v26, %v66
    %v69 = vld [vmem:[%s1] sm:$0x1]
    %v71 = vperm.slane %v69, 0
    %v73 = vmul.f32 %v67, %v71
    %v74 = vmul.f32 %v68, %v71
    %v75 = vpack.c.bf16 %v73, %v73
    %v76 = vpack.c.bf16 %v74, %v74
    %vm77 = vcmask 257024
    %78 = vst.msk [vmem:[#allocation2] sm:$0xf] %vm77, %v75
    %79 = vst.msk [vmem:[#allocation2 + $0x4] sm:$0xf] %vm77, %v76
    %80 = vst.msk [vmem:[#allocation3] sm:$0xff] %vm29, 0.0
    %81 = vst.msk [vmem:[#allocation3 + $0x8] sm:$0xff] %vm29, 0.0
  $region25: #{forward.9} parent=0 // pred_fallthru
    _
  %v82 = vld [vmem:[#allocation2] sm:$0xf]
  %v83 = vld [vmem:[#allocation2 + $0x4] sm:$0xf]
  %v84 = vld [vmem:[%s2] sm:$0xf]
  %v85 = vld [vmem:[%s2 + $0x4] sm:$0xf]
  %v86 = vld [vmem:[%s2 + $0x8] sm:$0xf]
  %v87 = vld [vmem:[%s2 + $0xc] sm:$0xf]
  %v90 = vunpack.c.l.b16 %v82
  %v91 = vunpack.c.l.b16 %v83
  %v92 = vpack.c.b16 %v91, %v90
  %v97 = vunpack.c.l.b16 %v84
  %v98 = vunpack.c.l.b16 %v85
  %v99 = vunpack.c.l.b16 %v86
  %v100 = vunpack.c.l.b16 %v87
  %v101 = vpack.c.b16 %v98, %v97
  %v102 = vpack.c.b16 %v100, %v99
  %vm105 = vcmask 261120
  %v107 = vsel %vm105, %v92, 0
  %109 = vmatpush.bf16.msra.mxu0 0
  %110 = vmatpush.bf16.msra.mxu0 0
  %111 = vmatpush.bf16.msra.mxu0 0
  %112 = vmatpush.bf16.msra.mxu0 0
  %113 = vmatpush.bf16.msra.mxu0 0
  %114 = vmatpush.bf16.msra.mxu0 0
  %115 = vmatpush.bf16.msra.mxu0 %v102
  %116 = vmatpush.bf16.msra.mxu0 %v101
  %117 = vmatmul.bf16.gmra.mxu0 %v107
  %v118 = vpop.f32.mrf.mxu0
  %v119 = vadd.f32 0.0, %v118
  %v120 = vpop.f32.mrf.mxu0
  %v121 = vadd.f32 0.0, %v120
  %122 = vdwg.mxu0
  %v123 = vld [vmem:[%s3] sm:$0xf]
  %v124 = vld [vmem:[%s3 + $0x4] sm:$0xf]
  %v125 = vld [vmem:[%s3 + $0x8] sm:$0xf]
  %v126 = vld [vmem:[%s3 + $0xc] sm:$0xf]
  %v131 = vunpack.c.l.b16 %v123
  %v132 = vunpack.c.l.b16 %v124
  %v133 = vunpack.c.l.b16 %v125
  %v134 = vunpack.c.l.b16 %v126
  %v135 = vpack.c.b16 %v132, %v131
  %v136 = vpack.c.b16 %v134, %v133
  %139 = vmatpush.bf16.msra.mxu0 0
  %140 = vmatpush.bf16.msra.mxu0 0
  %141 = vmatpush.bf16.msra.mxu0 0
  %142 = vmatpush.bf16.msra.mxu0 0
  %143 = vmatpush.bf16.msra.mxu0 0
  %144 = vmatpush.bf16.msra.mxu0 0
  %145 = vmatpush.bf16.msra.mxu0 %v136
  %146 = vmatpush.bf16.msra.mxu0 %v135
  %147 = vmatmul.bf16.gmra.mxu0 %v107
  %v148 = vpop.f32.mrf.mxu0
  %v149 = vadd.f32 0.0, %v148
  %v150 = vpop.f32.mrf.mxu0
  %v151 = vadd.f32 0.0, %v150
  %152 = vdwg.mxu0
  %v153 = vxor.u32 %v119, 2147483648
  %v154 = vxor.u32 %v121, 2147483648
  %v155 = vmul.f32 %v153, 1.442695
  %v156 = vpow.pop %v155
  %v157 = vmul.f32 %v154, 1.442695
  %v158 = vpow.pop %v157
  %v159 = vadd.f32 %v156, 1.0
  %v160 = vadd.f32 %v158, 1.0
  %v161 = vrcp.pop %v159
  %v162 = vmul.f32 %v159, %v161
  %v163 = vsub.f32 1.0, %v162
  %v164 = vmul.f32 %v161, %v163
  %v165 = vadd.f32 %v161, %v164
  %vm166 = vweird.f32 %v159
  %vm167 = vweird.f32 %v161
  %vm168 = vmor %vm166, %vm167
  %v169 = vsel %vm168, %v161, %v165
  %v170 = vand.u32 2147483647, %v159
  %vm171 = vcmp.eq.f32.partialorder %v170, 8.507059e+37
  %v172 = vand.u32 %v159, 2147483648
  %v173 = vor.u32 1.1754944e-38, %v172
  %v174 = vsel %vm171, %v173, %v169
  %v175 = vmul.f32 1.0, %v174
  %v176 = vrcp.pop %v160
  %v177 = vmul.f32 %v160, %v176
  %v178 = vsub.f32 1.0, %v177
  %v179 = vmul.f32 %v176, %v178
  %v180 = vadd.f32 %v176, %v179
  %vm181 = vweird.f32 %v160
  %vm182 = vweird.f32 %v176
  %vm183 = vmor %vm181, %vm182
  %v184 = vsel %vm183, %v176, %v180
  %v185 = vand.u32 2147483647, %v160
  %vm186 = vcmp.eq.f32.partialorder %v185, 8.507059e+37
  %v187 = vand.u32 %v160, 2147483648
  %v188 = vor.u32 1.1754944e-38, %v187
  %v189 = vsel %vm186, %v188, %v184
  %v190 = vmul.f32 1.0, %v189
  %v191 = vmul.f32 %v119, %v175
  %v192 = vmul.f32 %v121, %v190
  %v193 = vmul.f32 %v191, %v149
  %v194 = vmul.f32 %v192, %v151
  %v195 = vld [vmem:[#allocation3] sm:$0xff]
  %v196 = vld [vmem:[#allocation3 + $0x8] sm:$0xff]
  %v197 = vpack.c.bf16 %v194, %v193
  %v198 = vld [vmem:[%s4] sm:$0xf]
  %v199 = vld [vmem:[%s4 + $0x4] sm:$0xf]
  %v200 = vld [vmem:[%s4 + $0x8] sm:$0xf]
  %v201 = vld [vmem:[%s4 + $0xc] sm:$0xf]
  %v202 = vld [vmem:[%s4 + $0x10] sm:$0xf]
  %v203 = vld [vmem:[%s4 + $0x14] sm:$0xf]
  %v204 = vld [vmem:[%s4 + $0x18] sm:$0xf]
  %v205 = vld [vmem:[%s4 + $0x1c] sm:$0xf]
  %v214 = vunpack.c.l.b16 %v198
  %v215 = vunpack.c.l.b16 %v199
  %v216 = vunpack.c.l.b16 %v200
  %v217 = vunpack.c.l.b16 %v201
  %v218 = vunpack.c.l.b16 %v202
  %v219 = vunpack.c.l.b16 %v203
  %v220 = vunpack.c.l.b16 %v204
  %v221 = vunpack.c.l.b16 %v205
  %v222 = vpack.c.b16 %v215, %v214
  %v223 = vpack.c.b16 %v217, %v216
  %v224 = vpack.c.b16 %v219, %v218
  %v225 = vpack.c.b16 %v221, %v220
  %vm230 = vcmask 523264
  %v232 = vsel %vm230, %v197, 0
  %234 = vmatpush.bf16.msra.mxu0 0
  %235 = vmatpush.bf16.msra.mxu0 0
  %236 = vmatpush.bf16.msra.mxu0 0
  %237 = vmatpush.bf16.msra.mxu0 0
  %238 = vmatpush.bf16.msra.mxu0 %v225
  %239 = vmatpush.bf16.msra.mxu0 %v224
  %240 = vmatpush.bf16.msra.mxu0 %v223
  %241 = vmatpush.bf16.msra.mxu0 %v222
  %242 = vmatmul.bf16.gmra.mxu0 %v232
  %v243 = vpop.f32.mrf.mxu0
  %v244 = vadd.f32 0.0, %v243
  %v245 = vpop.f32.mrf.mxu0
  %v246 = vadd.f32 0.0, %v245
  %247 = vdwg.mxu0
  %v248 = vadd.f32 %v195, %v244
  %v249 = vadd.f32 %v196, %v246
  %250 = vst.msk [vmem:[#allocation3] sm:$0xff] %vm105, %v248
  %251 = vst.msk [vmem:[#allocation3 + $0x8] sm:$0xff] %vm105, %v249
  // Predicated region
  $region26: #{forward.9} parent=0 // pred_check
    %p252 = pneg %p21
  $region27: #{forward.9} parent=0 // pred_check_branch
    %254 = sbr.rel (%p252) target = $region29
  $region28: #{forward.9} parent=0 // pred_region
    %v255 = vld [vmem:[%s0] sm:$0xff]
    %v256 = vld [vmem:[%s0 + $0x8] sm:$0xff]
    %v257 = vld [vmem:[#allocation3] sm:$0xff]
    %v258 = vld [vmem:[#allocation3 + $0x8] sm:$0xff]
    %v259 = vadd.f32 %v255, %v257
    %v260 = vadd.f32 %v256, %v258
    %261 = vst.msk [vmem:[%s5] sm:$0xff] %vm105, %v259
    %262 = vst.msk [vmem:[%s5 + $0x8] sm:$0xff] %vm105, %v260
  $region29: #{forward.9} parent=0 // pred_fallthru
    _
  // Predicated region
  $region30: #{forward.9} parent=0 // pred_check
    _
  $region31: #{forward.9} parent=0 // pred_check_branch
    %264 = sbr.rel (0) target = $region33
  $region32: #{forward.9} parent=0 // pred_region
    _
  $region33: #{forward.9} parent=0 // pred_fallthru
    _
  // Predicated region
  $region34: #{forward.9} parent=0 // pred_check
    _
  $region35: #{forward.9} parent=0 // pred_check_branch
    %266 = sbr.rel (0) target = $region37
  $region36: #{forward.9} parent=0 // pred_region
    _
  $region37: #{forward.9} parent=0 // pred_fallthru
    _

// kernel: forward.13
$region0: #{forward.13}
  #allocation0 [shape = 'u32[]', space=smem, size = 0x4, offset = 0x4, fixed_abs, tag = 'smem constant byte address 0x4 - core index']
  #allocation1 [shape = 'u32[72,128]{1,0:T(1,128)}', space=vmem, size = 0x9000, scoped, tag = 'internal scratch']
  %s0 = inlined_call_operand.vmem [shape: f32[16,32], index: 0, kind: input, shape index: {}]
  %s1 = inlined_call_operand.vmem [shape: f32[1,32], index: 1, kind: input, shape index: {}]
  %s2 = inlined_call_operand.hbm [shape: f32[16,32], index: 2, kind: output, shape index: {}]
  %s3 = sld [smem:[#allocation0]]
  $region18: #{forward.13} parent=0
    _
  %s5 = ssub.s32 1, %s3
  %s6 = scalar_select 0, %s5, %s3
  $region1: #{forward.13} parent=0
    #allocation2 [shape = 'u8[8192]{0}', space=vmem, size = 0x2000, scoped, tag = 'output window, operand 0, single buffered']
    #allocation3 [shape = 's32[1]{0}', space=sflag, size = 0x4, scoped, tag = 'scoped memory for forward.13']
    %7 = vsyncpa [#allocation3], 0
    // Predicated region
    $region2: #{forward.13} parent=1 // pred_check
      _
    $region3: #{forward.13} parent=1 // pred_check_branch
      %9 = sbr.rel (0) target = $region5
    $region4: #{forward.13} parent=1 // pred_region
      _
    $region5: #{forward.13} parent=1 // pred_fallthru
      _
    // Predicated region
    $region6: #{forward.13} parent=1 // pred_check
      _
    $region7: #{forward.13} parent=1 // pred_check_branch
      %11 = sbr.rel (0) target = $region9
    $region8: #{forward.13} parent=1 // pred_region
      _
    $region9: #{forward.13} parent=1 // pred_fallthru
      _
    %v12 = vld [vmem:[%s0] sm:$0xff]
    %v13 = vld [vmem:[%s0 + $0x8] sm:$0xff]
    %v14 = vmul.f32 %v12, %v12
    %v15 = vmul.f32 %v13, %v13
    %vm16 = vcmask 261120
    %v17 = vsel %vm16, %v14, 0.0
    %18 = vadd.xlane.f32.xlu0 %v17
    %v19 = vpop.xlane.xlu0 %18
    %v20 = vsel %vm16, %v15, 0.0
    %21 = vadd.xlane.f32.xlu0 %v20
    %v22 = vpop.xlane.xlu0 %21
    %v23 = vrcp.pop 32.0
    %v24 = vmul.f32 32.0, %v23
    %v25 = vsub.f32 1.0, %v24
    %v26 = vmul.f32 %v23, %v25
    %v27 = vadd.f32 %v23, %v26
    %vm28 = vweird.f32 %v23
    %v29 = vsel %vm28, %v23, %v27
    %v30 = vmul.f32 %v19, %v29
    %v31 = vmul.f32 %v22, %v29
    %v32 = vld [vmem:[%s1] sm:$0x1]
    %v33 = vadd.f32 %v30, 1e-06
    %v34 = vadd.f32 %v31, 1e-06
    %v35 = vrsqrt.pop %v33
    %v36 = vmul.f32 %v35, %v33
    %v37 = vmul.f32 %v36, %v35
    %v38 = vmul.f32 0.5, %v37
    %v39 = vsub.f32 1.5, %v38
    %v40 = vmul.f32 %v35, %v39
    %vm41 = vweird.f32 %v33
    %vm42 = vweird.f32 %v35
    %vm43 = vmor %vm41, %vm42
    %v44 = vsel %vm43, %v35, %v40
    %v45 = vrsqrt.pop %v34
    %v46 = vmul.f32 %v45, %v34
    %v47 = vmul.f32 %v46, %v45
    %v48 = vmul.f32 0.5, %v47
    %v49 = vsub.f32 1.5, %v48
    %v50 = vmul.f32 %v45, %v49
    %vm51 = vweird.f32 %v34
    %vm52 = vweird.f32 %v45
    %vm53 = vmor %vm51, %vm52
    %v54 = vsel %vm53, %v45, %v50
    %v55 = vmul.f32 %v12, %v44
    %v56 = vmul.f32 %v13, %v54
    %v58 = vperm.slane %v32, 0
    %v60 = vmul.f32 %v58, %v55
    %v61 = vmul.f32 %v58, %v56
    %62 = vst.msk [vmem:[#allocation2] sm:$0xff] %vm16, %v60
    %63 = vst.msk [vmem:[#allocation2 + $0x8] sm:$0xff] %vm16, %v61
    // Predicated region
    $region10: #{forward.13} parent=1 // pred_check
      _
    $region11: #{forward.13} parent=1 // pred_check_branch
      %65 = sbr.rel (0) target = $region13
    $region12: #{forward.13} parent=1 // pred_region
      %67 = vsyncadd [#allocation3], 0
      %s68 = sshll.u32 [#allocation2], 4
      %s69 = int_to_ptr.vmem [resolvable:$true] %s68
      %s70 = sshll.u32 %s2, 4
      %s71 = int_to_ptr.hbm [resolvable:$true] %s70
      %76 = dma.vmem_to_hbm [thread:$0]  %s69, 256, %s71, [#allocation3], 128, 128, 8
    $region13: #{forward.13} parent=1 // pred_fallthru
      _
    // Predicated region
    $region14: #{forward.13} parent=1 // pred_check
      _
    $region15: #{forward.13} parent=1 // pred_check_branch
      %78 = sbr.rel (0) target = $region17
    $region16: #{forward.13} parent=1 // pred_region
      %80 = dma.done [#allocation3], 256
    $region17: #{forward.13} parent=1 // pred_fallthru
      _
    %81 = vsyncpa [#allocation3], 1

// kernel: forward.8
$region0: #{forward.8}
  #allocation0 [shape = 'u32[]', space=smem, size = 0x4, offset = 0x4, fixed_abs, tag = 'smem constant byte address 0x4 - core index']
  #allocation1 [shape = 'u32[72,128]{1,0:T(1,128)}', space=vmem, size = 0x9000, scoped, tag = 'internal scratch']
  #allocation2 [shape = 'f32[2,8,1]{2,1,0:T(8,128)}', space=vmem, size = 0x2000, scoped, tag = 'scratch operand']
  #allocation3 [shape = 'f32[2,8,1]{2,1,0:T(8,128)}', space=vmem, size = 0x2000, scoped, tag = 'scratch operand']
  #allocation4 [shape = 'f32[2,8,16]{2,1,0:T(8,128)}', space=vmem, size = 0x2000, scoped, tag = 'scratch operand']
  #allocation5 [shape = 'bf16[8,32]{1,0:T(8,128)(2,1)}', space=vmem, size = 0x800, scoped, tag = 'scratch operand']
  %s0 = inlined_call_operand.vmem [shape: bf16[2,2,8,16], index: 0, kind: input, shape index: {}]
  %s1 = inlined_call_operand.vmem [shape: bf16[2,2,8,8], index: 1, kind: input, shape index: {}]
  %s2 = inlined_call_operand.vmem [shape: bf16[2,2,8,16], index: 2, kind: input, shape index: {}]
  %s3 = inlined_call_operand.vmem [shape: bf16[2,1,8,8], index: 3, kind: input, shape index: {}]
  %s4 = inlined_call_operand.vmem [shape: bf16[2,2,8,16], index: 4, kind: input, shape index: {}]
  %s5 = inlined_call_operand.vmem [shape: f32[2,8,32], index: 5, kind: input, shape index: {}]
  %s6 = inlined_call_operand.vmem [shape: bf16[32,32], index: 6, kind: input, shape index: {}]
  %s7 = inlined_call_operand.vmem [shape: f32[2,8,32], index: 7, kind: output, shape index: {}]
  %s8 = sld [smem:[#allocation0]]
  $region69: #{forward.8} parent=0
    _
  %s10 = ssub.s32 1, %s8
  %s11 = scalar_select 0, %s10, %s8
  loop: start=0, step=1, limit=4
  $region2: #{forward.8} parent=0 // loop_pre_header
    _
  $region3: #{forward.8} parent=0 // loop_header
    %s13 = sphi 0, %s17
    %p14 = scmp.ge.s32.totalorder %s13, 4
    %s20 = sphi 0, %s39
    %s21 = sphi 0, %s35
    %s22 = sphi 0, %s31
    %s23 = sphi 0, %s20
    %s24 = sphi 0, %s21
    %s25 = sphi 0, %s22
    %s26 = sphi 0, %s23
    %s27 = sphi 0, %s24
    %s28 = sphi 0, %s25
    %s44 = sphi 0, %s46
    %s47 = sphi 0, %s44
    %s48 = sphi 0, %s47
    %s64 = sphi 0, %s48
    %s72 = sphi 0, %s74
    %s75 = sphi 0, %s72
    %s76 = sphi 0, %s75
    %s92 = sphi 0, %s76
    %s100 = sphi 0, %s102
    %s103 = sphi 0, %s100
    %s104 = sphi 0, %s103
    %s120 = sphi 0, %s104
    %s128 = sphi 0, %s130
    %s131 = sphi 0, %s128
    %s132 = sphi 0, %s131
    %s148 = sphi 0, %s132
    %s156 = sphi 0, %s158
    %s159 = sphi 0, %s156
    %s160 = sphi 0, %s159
    %s176 = sphi 0, %s160
    %s184 = sphi 0, %s186
    %s187 = sphi 0, %s184
    %s188 = sphi 0, %s187
    %s204 = sphi 0, %s188
    %s208 = sphi 0, %s208
    %s210 = sphi 0, %s208
    %s211 = sphi 0, %s210
    %s225 = sphi 0, %s211
    %s233 = sphi 0, %s235
    %s236 = sphi 0, %s233
    %s237 = sphi 0, %s236
    %s253 = sphi 0, %s237
  $region4: #{forward.8} parent=0 // loop_header_branch
    %16 = sbr.rel (%p14) target = $region8
  $region5: #{forward.8} parent=0 // loop_body
    %s18 = ssub.s32 %s13, 1
    %s19 = ssub.s32 %s13, 2
    %s29 = sadd.s32 1, %s22
    %p30 = scmp.ge.s32.totalorder %s29, 1
    %s31 = scalar_select %p30, 0, %s29
    %s32 = sadd.s32 1, %s21
    %s33 = scalar_select %p30, %s32, %s21
    %p34 = scmp.ge.s32.totalorder %s33, 1
    %s35 = scalar_select %p34, 0, %s33
    %s36 = sadd.s32 1, %s20
    %s37 = scalar_select %p34, %s36, %s20
    %p38 = scmp.ge.s32.totalorder %s37, 2
    %s39 = scalar_select %p38, 0, %s37
    %s40 = ssub.s32 %s20, %s39
    %s41 = ssub.s32 %s21, %s35
    %s42 = sor.u32 %s40, %s41
    %p43 = scmp.eq.s32.totalorder %s42, 0
    %s45 = sadd.s32 %s44, 1
    %s46 = scalar_select %p43, %s44, %s45
    %p49 = pneg %p43
    %p50 = scmp.eq.s32.totalorder %s13, 1
    %p51 = por %p49, %p50
    %p52 = scmp.ne.s32.totalorder %s44, %s47
    %p53 = scmp.eq.s32.totalorder %s13, 0
    %p54 = por %p52, %p53
    %p55 = scmp.ne.s32.totalorder %s44, %s47
    %p56 = scmp.eq.s32.totalorder %s18, 1
    %p57 = por %p55, %p56
    %p58 = scmp.ne.s32.totalorder %s47, %s48
    %p59 = scmp.eq.s32.totalorder %s18, 0
    %p60 = por %p58, %p59
    %p61 = scmp.ne.s32.totalorder %s47, %s48
    %p62 = scmp.eq.s32.totalorder %s19, 1
    %p63 = por %p61, %p62
    %p65 = scmp.ne.s32.totalorder %s48, %s64
    %p66 = scmp.eq.s32.totalorder %s19, 0
    %p67 = por %p65, %p66
    %s68 = ssub.s32 %s20, %s39
    %s69 = ssub.s32 %s21, %s35
    %s70 = sor.u32 %s68, %s69
    %p71 = scmp.eq.s32.totalorder %s70, 0
    %s73 = sadd.s32 %s72, 1
    %s74 = scalar_select %p71, %s72, %s73
    %p77 = pneg %p71
    %p78 = scmp.eq.s32.totalorder %s13, 1
    %p79 = por %p77, %p78
    %p80 = scmp.ne.s32.totalorder %s72, %s75
    %p81 = scmp.eq.s32.totalorder %s13, 0
    %p82 = por %p80, %p81
    %p83 = scmp.ne.s32.totalorder %s72, %s75
    %p84 = scmp.eq.s32.totalorder %s18, 1
    %p85 = por %p83, %p84
    %p86 = scmp.ne.s32.totalorder %s75, %s76
    %p87 = scmp.eq.s32.totalorder %s18, 0
    %p88 = por %p86, %p87
    %p89 = scmp.ne.s32.totalorder %s75, %s76
    %p90 = scmp.eq.s32.totalorder %s19, 1
    %p91 = por %p89, %p90
    %p93 = scmp.ne.s32.totalorder %s76, %s92
    %p94 = scmp.eq.s32.totalorder %s19, 0
    %p95 = por %p93, %p94
    %s96 = ssub.s32 %s20, %s39
    %s97 = ssub.s32 %s22, %s31
    %s98 = sor.u32 %s96, %s97
    %p99 = scmp.eq.s32.totalorder %s98, 0
    %s101 = sadd.s32 %s100, 1
    %s102 = scalar_select %p99, %s100, %s101
    %p105 = pneg %p99
    %p106 = scmp.eq.s32.totalorder %s13, 1
    %p107 = por %p105, %p106
    %p108 = scmp.ne.s32.totalorder %s100, %s103
    %p109 = scmp.eq.s32.totalorder %s13, 0
    %p110 = por %p108, %p109
    %p111 = scmp.ne.s32.totalorder %s100, %s103
    %p112 = scmp.eq.s32.totalorder %s18, 1
    %p113 = por %p111, %p112
    %p114 = scmp.ne.s32.totalorder %s103, %s104
    %p115 = scmp.eq.s32.totalorder %s18, 0
    %p116 = por %p114, %p115
    %p117 = scmp.ne.s32.totalorder %s103, %s104
    %p118 = scmp.eq.s32.totalorder %s19, 1
    %p119 = por %p117, %p118
    %p121 = scmp.ne.s32.totalorder %s104, %s120
    %p122 = scmp.eq.s32.totalorder %s19, 0
    %p123 = por %p121, %p122
    %s124 = ssub.s32 %s20, %s39
    %s125 = ssub.s32 %s22, %s31
    %s126 = sor.u32 %s124, %s125
    %p127 = scmp.eq.s32.totalorder %s126, 0
    %s129 = sadd.s32 %s128, 1
    %s130 = scalar_select %p127, %s128, %s129
    %p133 = pneg %p127
    %p134 = scmp.eq.s32.totalorder %s13, 1
    %p135 = por %p133, %p134
    %p136 = scmp.ne.s32.totalorder %s128, %s131
    %p137 = scmp.eq.s32.totalorder %s13, 0
    %p138 = por %p136, %p137
    %p139 = scmp.ne.s32.totalorder %s128, %s131
    %p140 = scmp.eq.s32.totalorder %s18, 1
    %p141 = por %p139, %p140
    %p142 = scmp.ne.s32.totalorder %s131, %s132
    %p143 = scmp.eq.s32.totalorder %s18, 0
    %p144 = por %p142, %p143
    %p145 = scmp.ne.s32.totalorder %s131, %s132
    %p146 = scmp.eq.s32.totalorder %s19, 1
    %p147 = por %p145, %p146
    %p149 = scmp.ne.s32.totalorder %s132, %s148
    %p150 = scmp.eq.s32.totalorder %s19, 0
    %p151 = por %p149, %p150
    %s152 = ssub.s32 %s20, %s39
    %s153 = ssub.s32 %s22, %s31
    %s154 = sor.u32 %s152, %s153
    %p155 = scmp.eq.s32.totalorder %s154, 0
    %s157 = sadd.s32 %s156, 1
    %s158 = scalar_select %p155, %s156, %s157
    %p161 = pneg %p155
    %p162 = scmp.eq.s32.totalorder %s13, 1
    %p163 = por %p161, %p162
    %p164 = scmp.ne.s32.totalorder %s156, %s159
    %p165 = scmp.eq.s32.totalorder %s13, 0
    %p166 = por %p164, %p165
    %p167 = scmp.ne.s32.totalorder %s156, %s159
    %p168 = scmp.eq.s32.totalorder %s18, 1
    %p169 = por %p167, %p168
    %p170 = scmp.ne.s32.totalorder %s159, %s160
    %p171 = scmp.eq.s32.totalorder %s18, 0
    %p172 = por %p170, %p171
    %p173 = scmp.ne.s32.totalorder %s159, %s160
    %p174 = scmp.eq.s32.totalorder %s19, 1
    %p175 = por %p173, %p174
    %p177 = scmp.ne.s32.totalorder %s160, %s176
    %p178 = scmp.eq.s32.totalorder %s19, 0
    %p179 = por %p177, %p178
    %s180 = ssub.s32 %s20, %s39
    %s181 = ssub.s32 %s21, %s35
    %s182 = sor.u32 %s180, %s181
    %p183 = scmp.eq.s32.totalorder %s182, 0
    %s185 = sadd.s32 %s184, 1
    %s186 = scalar_select %p183, %s184, %s185
    %p189 = pneg %p183
    %p190 = scmp.eq.s32.totalorder %s13, 1
    %p191 = por %p189, %p190
    %p192 = scmp.ne.s32.totalorder %s184, %s187
    %p193 = scmp.eq.s32.totalorder %s13, 0
    %p194 = por %p192, %p193
    %p195 = scmp.ne.s32.totalorder %s184, %s187
    %p196 = scmp.eq.s32.totalorder %s18, 1
    %p197 = por %p195, %p196
    %p198 = scmp.ne.s32.totalorder %s187, %s188
    %p199 = scmp.eq.s32.totalorder %s18, 0
    %p200 = por %p198, %p199
    %p201 = scmp.ne.s32.totalorder %s187, %s188
    %p202 = scmp.eq.s32.totalorder %s19, 1
    %p203 = por %p201, %p202
    %p205 = scmp.ne.s32.totalorder %s188, %s204
    %p206 = scmp.eq.s32.totalorder %s19, 0
    %p207 = por %p205, %p206
    %s209 = sadd.s32 %s208, 1
    %p212 = scmp.eq.s32.totalorder %s13, 1
    %p213 = scmp.ne.s32.totalorder %s208, %s210
    %p214 = scmp.eq.s32.totalorder %s13, 0
    %p215 = por %p213, %p214
    %p216 = scmp.ne.s32.totalorder %s208, %s210
    %p217 = scmp.eq.s32.totalorder %s18, 1
    %p218 = por %p216, %p217
    %p219 = scmp.ne.s32.totalorder %s210, %s211
    %p220 = scmp.eq.s32.totalorder %s18, 0
    %p221 = por %p219, %p220
    %p222 = scmp.ne.s32.totalorder %s210, %s211
    %p223 = scmp.eq.s32.totalorder %s19, 1
    %p224 = por %p222, %p223
    %p226 = scmp.ne.s32.totalorder %s211, %s225
    %p227 = scmp.eq.s32.totalorder %s19, 0
    %p228 = por %p226, %p227
    %s229 = ssub.s32 %s20, %s39
    %s230 = ssub.s32 %s21, %s35
    %s231 = sor.u32 %s229, %s230
    %p232 = scmp.eq.s32.totalorder %s231, 0
    %s234 = sadd.s32 %s233, 1
    %s235 = scalar_select %p232, %s233, %s234
    %p238 = pneg %p232
    %p239 = scmp.eq.s32.totalorder %s13, 1
    %p240 = por %p238, %p239
    %p241 = scmp.ne.s32.totalorder %s233, %s236
    %p242 = scmp.eq.s32.totalorder %s13, 0
    %p243 = por %p241, %p242
    %p244 = scmp.ne.s32.totalorder %s233, %s236
    %p245 = scmp.eq.s32.totalorder %s18, 1
    %p246 = por %p244, %p245
    %p247 = scmp.ne.s32.totalorder %s236, %s237
    %p248 = scmp.eq.s32.totalorder %s18, 0
    %p249 = por %p247, %p248
    %p250 = scmp.ne.s32.totalorder %s236, %s237
    %p251 = scmp.eq.s32.totalorder %s19, 1
    %p252 = por %p250, %p251
    %p254 = scmp.ne.s32.totalorder %s237, %s253
    %p255 = scmp.eq.s32.totalorder %s19, 0
    %p256 = por %p254, %p255
    %p257 = scmp.le.s32.totalorder 1, %s13
    %p258 = scmp.lt.s32.totalorder %s13, 3
    %p259 = pnand %p257, %p258
    %p260 = pneg %p259
    // Predicated region
    $region9: #{forward.8} parent=5 // pred_check
      _
    $region10: #{forward.8} parent=5 // pred_check_branch
      %262 = sbr.rel (%p259) target = $region12
    $region11: #{forward.8} parent=5 // pred_region
      %s263 = ssub.s32 %s13, 1
      // Predicated region
      $region13: #{forward.8} parent=11 // pred_check
        %p264 = pneg %p221
      $region14: #{forward.8} parent=11 // pred_check_branch
        %266 = sbr.rel (%p264) target = $region16
      $region15: #{forward.8} parent=11 // pred_region
        _
      $region16: #{forward.8} parent=11 // pred_fallthru
        _
    $region12: #{forward.8} parent=5 // pred_fallthru
      _
    %p267 = scmp.lt.s32.totalorder %s13, 2
    // Predicated region
    $region17: #{forward.8} parent=5 // pred_check
      %p268 = pneg %p267
    $region18: #{forward.8} parent=5 // pred_check_branch
      %270 = sbr.rel (%p268) target = $region20
    $region19: #{forward.8} parent=5 // pred_region
      // Predicated region
      $region21: #{forward.8} parent=19 // pred_check
        %p271 = pneg %p54
      $region22: #{forward.8} parent=19 // pred_check_branch
        %273 = sbr.rel (%p271) target = $region24
      $region23: #{forward.8} parent=19 // pred_region
        %p274 = scmp.lt.s32.totalorder %s20, 1
        %s275 = scalar_select %p274, %s20, 1
        %p276 = scmp.lt.s32.totalorder %s21, 0
        %s277 = scalar_select %p276, %s21, 0
        %s278 = smul.addr %s275, 2
        %s279 = sadd.s32 %s277, %s278
        %s280 = smul.addr %s279, 4
        %s281 = scalar_lea.vmem %s0, %s280
      $region24: #{forward.8} parent=19 // pred_fallthru
        _
      // Predicated region
      $region25: #{forward.8} parent=19 // pred_check
        %p282 = pneg %p82
      $region26: #{forward.8} parent=19 // pred_check_branch
        %284 = sbr.rel (%p282) target = $region28
      $region27: #{forward.8} parent=19 // pred_region
        %p285 = scmp.lt.s32.totalorder %s20, 1
        %s286 = scalar_select %p285, %s20, 1
        %p287 = scmp.lt.s32.totalorder %s21, 0
        %s288 = scalar_select %p287, %s21, 0
        %s289 = smul.addr %s286, 2
        %s290 = sadd.s32 %s288, %s289
        %s291 = smul.addr %s290, 4
        %s292 = scalar_lea.vmem %s1, %s291
      $region28: #{forward.8} parent=19 // pred_fallthru
        _
      // Predicated region
      $region29: #{forward.8} parent=19 // pred_check
        %p293 = pneg %p110
      $region30: #{forward.8} parent=19 // pred_check_branch
        %295 = sbr.rel (%p293) target = $region32
      $region31: #{forward.8} parent=19 // pred_region
        %p296 = scmp.lt.s32.totalorder %s20, 1
        %s297 = scalar_select %p296, %s20, 1
        %p298 = scmp.lt.s32.totalorder %s22, 0
        %s299 = scalar_select %p298, %s22, 0
        %s300 = smul.addr %s297, 2
        %s301 = sadd.s32 %s299, %s300
        %s302 = smul.addr %s301, 4
        %s303 = scalar_lea.vmem %s2, %s302
      $region32: #{forward.8} parent=19 // pred_fallthru
        _
      // Predicated region
      $region33: #{forward.8} parent=19 // pred_check
        %p304 = pneg %p138
      $region34: #{forward.8} parent=19 // pred_check_branch
        %306 = sbr.rel (%p304) target = $region36
      $region35: #{forward.8} parent=19 // pred_region
        %p307 = scmp.lt.s32.totalorder %s20, 1
        %s308 = scalar_select %p307, %s20, 1
        %p309 = scmp.lt.s32.totalorder %s22, 0
        %s310 = scalar_select %p309, %s22, 0
        %s311 = sadd.s32 %s310, %s308
        %s312 = smul.addr %s311, 4
        %s313 = scalar_lea.vmem %s3, %s312
      $region36: #{forward.8} parent=19 // pred_fallthru
        _
      // Predicated region
      $region37: #{forward.8} parent=19 // pred_check
        %p314 = pneg %p166
      $region38: #{forward.8} parent=19 // pred_check_branch
        %316 = sbr.rel (%p314) target = $region40
      $region39: #{forward.8} parent=19 // pred_region
        %p317 = scmp.lt.s32.totalorder %s20, 1
        %s318 = scalar_select %p317, %s20, 1
        %p319 = scmp.lt.s32.totalorder %s22, 0
        %s320 = scalar_select %p319, %s22, 0
        %s321 = smul.addr %s318, 2
        %s322 = sadd.s32 %s320, %s321
        %s323 = smul.addr %s322, 4
        %s324 = scalar_lea.vmem %s4, %s323
      $region40: #{forward.8} parent=19 // pred_fallthru
        _
      // Predicated region
      $region41: #{forward.8} parent=19 // pred_check
        %p325 = pneg %p194
      $region42: #{forward.8} parent=19 // pred_check_branch
        %327 = sbr.rel (%p325) target = $region44
      $region43: #{forward.8} parent=19 // pred_region
        %p328 = scmp.lt.s32.totalorder %s20, 1
        %s329 = scalar_select %p328, %s20, 1
        %p330 = scmp.lt.s32.totalorder %s21, 0
        %s331 = scalar_select %p330, %s21, 0
        %s332 = sadd.s32 %s331, %s329
        %s333 = smul.addr %s332, 8
        %s334 = scalar_lea.vmem %s5, %s333
      $region44: #{forward.8} parent=19 // pred_fallthru
        _
    $region20: #{forward.8} parent=5 // pred_fallthru
      _
    %p335 = scmp.le.s32.totalorder 1, %s13
    %p336 = scmp.lt.s32.totalorder %s13, 3
    %p337 = pnand %p335, %p336
    %p338 = pneg %p337
    // Predicated region
    $region45: #{forward.8} parent=5 // pred_check
      _
    $region46: #{forward.8} parent=5 // pred_check_branch
      %340 = sbr.rel (%p337) target = $region48
    $region47: #{forward.8} parent=5 // pred_region
      %s341 = ssub.s32 %s13, 1
      %p342 = scmp.lt.s32.totalorder %s23, 1
      %s343 = scalar_select %p342, %s23, 1
      %p344 = scmp.lt.s32.totalorder %s24, 0
      %s345 = scalar_select %p344, %s24, 0
      %s346 = smul.addr %s343, 2
      %s347 = sadd.s32 %s345, %s346
      %s348 = smul.addr %s347, 4
      %s349 = scalar_lea.vmem %s0, %s348
      %p350 = pneg %p60
      %p351 = pneg %p57
      %p352 = scmp.lt.s32.totalorder %s23, 1
      %s353 = scalar_select %p352, %s23, 1
      %p354 = scmp.lt.s32.totalorder %s24, 0
      %s355 = scalar_select %p354, %s24, 0
      %s356 = smul.addr %s353, 2
      %s357 = sadd.s32 %s355, %s356
      %s358 = smul.addr %s357, 4
      %s359 = scalar_lea.vmem %s1, %s358
      %p360 = pneg %p88
      %p361 = pneg %p85
      %p362 = scmp.lt.s32.totalorder %s23, 1
      %s363 = scalar_select %p362, %s23, 1
      %p364 = scmp.lt.s32.totalorder %s25, 0
      %s365 = scalar_select %p364, %s25, 0
      %s366 = smul.addr %s363, 2
      %s367 = sadd.s32 %s365, %s366
      %s368 = smul.addr %s367, 4
      %s369 = scalar_lea.vmem %s2, %s368
      %p370 = pneg %p116
      %p371 = pneg %p113
      %p372 = scmp.lt.s32.totalorder %s23, 1
      %s373 = scalar_select %p372, %s23, 1
      %p374 = scmp.lt.s32.totalorder %s25, 0
      %s375 = scalar_select %p374, %s25, 0
      %s376 = sadd.s32 %s375, %s373
      %s377 = smul.addr %s376, 4
      %s378 = scalar_lea.vmem %s3, %s377
      %p379 = pneg %p144
      %p380 = pneg %p141
      %p381 = scmp.lt.s32.totalorder %s23, 1
      %s382 = scalar_select %p381, %s23, 1
      %p383 = scmp.lt.s32.totalorder %s25, 0
      %s384 = scalar_select %p383, %s25, 0
      %s385 = smul.addr %s382, 2
      %s386 = sadd.s32 %s384, %s385
      %s387 = smul.addr %s386, 4
      %s388 = scalar_lea.vmem %s4, %s387
      %p389 = pneg %p172
      %p390 = pneg %p169
      %p391 = scmp.lt.s32.totalorder %s23, 1
      %s392 = scalar_select %p391, %s23, 1
      %p393 = scmp.lt.s32.totalorder %s24, 0
      %s394 = scalar_select %p393, %s24, 0
      %s395 = sadd.s32 %s394, %s392
      %s396 = smul.addr %s395, 8
      %s397 = scalar_lea.vmem %s5, %s396
      %p398 = pneg %p200
      %p399 = pneg %p197
      %p400 = pneg %p221
      %p401 = pneg %p218
      %p402 = pneg %p249
      %p403 = pneg %p246
      %p404 = scmp.lt.s32.totalorder %s23, 1
      %s405 = scalar_select %p404, %s23, 1
      %p406 = scmp.lt.s32.totalorder %s24, 0
      %s407 = scalar_select %p406, %s24, 0
      %s408 = sadd.s32 %s407, %s405
      %s409 = smul.addr %s408, 8
      %s410 = scalar_lea.vmem %s7, %s409
      %p411 = scmp.lt.s32.totalorder %s23, 1
      %s412 = scalar_select %p411, %s23, 1
      %p413 = scmp.lt.s32.totalorder %s24, 0
      %s414 = scalar_select %p413, %s24, 0
      %s415 = smul.addr %s412, 2
      %s416 = sadd.s32 %s414, %s415
      %s417 = smul.addr %s416, 4
      %s418 = scalar_lea.vmem %s0, %s417
      %p419 = scmp.lt.s32.totalorder %s23, 1
      %s420 = scalar_select %p419, %s23, 1
      %p421 = scmp.lt.s32.totalorder %s24, 0
      %s422 = scalar_select %p421, %s24, 0
      %s423 = smul.addr %s420, 2
      %s424 = sadd.s32 %s422, %s423
      %s425 = smul.addr %s424, 4
      %s426 = scalar_lea.vmem %s1, %s425
      %p427 = scmp.lt.s32.totalorder %s23, 1
      %s428 = scalar_select %p427, %s23, 1
      %p429 = scmp.lt.s32.totalorder %s25, 0
      %s430 = scalar_select %p429, %s25, 0
      %s431 = smul.addr %s428, 2
      %s432 = sadd.s32 %s430, %s431
      %s433 = smul.addr %s432, 4
      %s434 = scalar_lea.vmem %s2, %s433
      %p435 = scmp.lt.s32.totalorder %s23, 1
      %s436 = scalar_select %p435, %s23, 1
      %p437 = scmp.lt.s32.totalorder %s25, 0
      %s438 = scalar_select %p437, %s25, 0
      %s439 = sadd.s32 %s438, %s436
      %s440 = smul.addr %s439, 4
      %s441 = scalar_lea.vmem %s3, %s440
      %p442 = scmp.lt.s32.totalorder %s23, 1
      %s443 = scalar_select %p442, %s23, 1
      %p444 = scmp.lt.s32.totalorder %s25, 0
      %s445 = scalar_select %p444, %s25, 0
      %s446 = smul.addr %s443, 2
      %s447 = sadd.s32 %s445, %s446
      %s448 = smul.addr %s447, 4
      %s449 = scalar_lea.vmem %s4, %s448
      %p450 = scmp.lt.s32.totalorder %s23, 1
      %s451 = scalar_select %p450, %s23, 1
      %p452 = scmp.lt.s32.totalorder %s24, 0
      %s453 = scalar_select %p452, %s24, 0
      %s454 = sadd.s32 %s453, %s451
      %s455 = smul.addr %s454, 8
      %s456 = scalar_lea.vmem %s5, %s455
      %p457 = scmp.lt.s32.totalorder %s23, 1
      %s458 = scalar_select %p457, %s23, 1
      %p459 = scmp.lt.s32.totalorder %s24, 0
      %s460 = scalar_select %p459, %s24, 0
      %s461 = sadd.s32 %s460, %s458
      %s462 = smul.addr %s461, 8
      %s463 = scalar_lea.vmem %s7, %s462
      %p465 = scmp.eq.s32.totalorder %s25, 0
      // Predicated region
      $region49: #{forward.8} parent=47 // pred_check
        %p466 = pneg %p465
      $region50: #{forward.8} parent=47 // pred_check_branch
        %468 = sbr.rel (%p466) target = $region52
      $region51: #{forward.8} parent=47 // pred_region
        %vm469 = vcmask 7168
        %470 = vst.msk [vmem:[#allocation2] sm:$0xff] %vm469, -1e+30
        %471 = vst.msk [vmem:[#allocation2 + $0x8] sm:$0xff] %vm469, -1e+30
        %472 = vst.msk [vmem:[#allocation3] sm:$0xff] %vm469, 0.0
        %473 = vst.msk [vmem:[#allocation3 + $0x8] sm:$0xff] %vm469, 0.0
        %vm474 = vcmask 130048
        %475 = vst.msk [vmem:[#allocation4] sm:$0xff] %vm474, 0.0
        %476 = vst.msk [vmem:[#allocation4 + $0x8] sm:$0xff] %vm474, 0.0
      $region52: #{forward.8} parent=47 // pred_fallthru
        _
      %v477 = vld [vmem:[%s418] sm:$0xf]
      %v478 = vld [vmem:[%s418 + $0x4] sm:$0xf]
      %v479 = vld [vmem:[%s426] sm:$0xf]
      %v480 = vld [vmem:[%s426 + $0x4] sm:$0xf]
      %v481 = vld [vmem:[%s434] sm:$0xf]
      %v482 = vld [vmem:[%s434 + $0x4] sm:$0xf]
      %v483 = vld [vmem:[%s441] sm:$0xf]
      %v484 = vld [vmem:[%s449] sm:$0xf]
      %v485 = vld [vmem:[%s449 + $0x4] sm:$0xf]
      %v488 = vunpack.c.l.b16 %v479
      %v489 = vunpack.c.l.b16 %v480
      %v490 = vpack.c.b16 %v489, %v488
      %vm491 = vcmask 64512
      %v493 = vsel %vm491, %v490, 0
      %v496 = vsel %vm491, %v483, 0
      %498 = vmatpush.bf16.xpose.msra.mxu0 0
      %499 = vmatpush.bf16.xpose.msra.mxu0 0
      %500 = vmatpush.bf16.xpose.msra.mxu0 0
      %501 = vmatpush.bf16.xpose.msra.mxu0 0
      %502 = vmatpush.bf16.xpose.msra.mxu0 0
      %503 = vmatpush.bf16.xpose.msra.mxu0 0
      %504 = vmatpush.bf16.xpose.msra.mxu0 0
      %505 = vmatpush.bf16.xpose.msra.mxu0 %v496
      %506 = vmatmul.bf16.gmra.mxu0 %v493
      %v507 = vpop.f32.mrf.mxu0
      %v508 = vadd.f32 0.0, %v507
      %v509 = vpop.f32.mrf.mxu0
      %v510 = vadd.f32 0.0, %v509
      %511 = vdwg.mxu0
      %vm512 = vcmask 130048
      %v514 = vsel %vm512, %v477, 0
      %v517 = vsel %vm512, %v481, 0
      %519 = vmatpush.bf16.xpose.msra.mxu0 0
      %520 = vmatpush.bf16.xpose.msra.mxu0 0
      %521 = vmatpush.bf16.xpose.msra.mxu0 0
      %522 = vmatpush.bf16.xpose.msra.mxu0 0
      %523 = vmatpush.bf16.xpose.msra.mxu0 0
      %524 = vmatpush.bf16.xpose.msra.mxu0 0
      %525 = vmatpush.bf16.xpose.msra.mxu0 0
      %526 = vmatpush.bf16.xpose.msra.mxu0 %v517
      %527 = vmatmul.bf16.gmra.mxu0 %v514
      %v528 = vpop.f32.mrf.mxu0
      %v529 = vadd.f32 %v508, %v528
      %v530 = vpop.f32.mrf.mxu0
      %531 = vdwg.mxu0
      %v533 = vsel %vm512, %v478, 0
      %v536 = vsel %vm512, %v482, 0
      %538 = vmatpush.bf16.xpose.msra.mxu0 0
      %539 = vmatpush.bf16.xpose.msra.mxu0 0
      %540 = vmatpush.bf16.xpose.msra.mxu0 0
      %541 = vmatpush.bf16.xpose.msra.mxu0 0
      %542 = vmatpush.bf16.xpose.msra.mxu0 0
      %543 = vmatpush.bf16.xpose.msra.mxu0 0
      %544 = vmatpush.bf16.xpose.msra.mxu0 0
      %545 = vmatpush.bf16.xpose.msra.mxu0 %v536
      %546 = vmatmul.bf16.gmra.mxu0 %v533
      %v547 = vpop.f32.mrf.mxu0
      %v548 = vadd.f32 %v510, %v547
      %v549 = vpop.f32.mrf.mxu0
      %550 = vdwg.mxu0
      %v551 = vmul.f32 %v529, 0.20412415
      %v552 = vmul.f32 %v548, 0.20412415
      %v553 = vld [vmem:[#allocation2] sm:$0xff]
      %v554 = vld [vmem:[#allocation2 + $0x8] sm:$0xff]
      %v555 = vsel %vm491, %v551, -inf
      %556 = vmax.xlane.f32.xlu0 %v555
      %v557 = vpop.xlane.xlu0 %556
      %v558 = vsel %vm491, %v552, -inf
      %559 = vmax.xlane.f32.xlu0 %v558
      %v560 = vpop.xlane.xlu0 %559
      %v561 = vmax.f32 %v553, %v557
      %v562 = vmax.f32 %v554, %v560
      %v563 = vsub.f32 %v553, %v561
      %v564 = vsub.f32 %v554, %v562
      %v565 = vmul.f32 %v563, 1.442695
      %v566 = vpow.pop %v565
      %v567 = vmul.f32 %v564, 1.442695
      %v568 = vpow.pop %v567
      %570 = vset.pattern.permute.xlu0 0
      %571 = vperm.xlu0 %570, %v561
      %v572 = vpop.permute.xlu0 %571
      %575 = vset.pattern.permute.xlu0 0
      %576 = vperm.xlu0 %575, %v562
      %v577 = vpop.permute.xlu0 %576
      %v579 = vsub.f32 %v551, %v572
      %v580 = vsub.f32 %v552, %v577
      %v581 = vmul.f32 %v579, 1.442695
      %v582 = vpow.pop %v581
      %v583 = vmul.f32 %v580, 1.442695
      %v584 = vpow.pop %v583
      %v585 = vld [vmem:[#allocation3] sm:$0xff]
      %v586 = vld [vmem:[#allocation3 + $0x8] sm:$0xff]
      %v587 = vmul.f32 %v566, %v585
      %v588 = vmul.f32 %v568, %v586
      %v589 = vsel %vm491, %v582, 0.0
      %590 = vadd.xlane.f32.xlu0 %v589
      %v591 = vpop.xlane.xlu0 %590
      %v592 = vsel %vm491, %v584, 0.0
      %593 = vadd.xlane.f32.xlu0 %v592
      %v594 = vpop.xlane.xlu0 %593
      %v595 = vadd.f32 %v587, %v591
      %v596 = vadd.f32 %v588, %v594
      %vm597 = vcmask 7168
      %598 = vst.msk [vmem:[#allocation3] sm:$0xff] %vm597, %v595
      %599 = vst.msk [vmem:[#allocation3 + $0x8] sm:$0xff] %vm597, %v596
      %v600 = vld [vmem:[#allocation4] sm:$0xff]
      %v601 = vld [vmem:[#allocation4 + $0x8] sm:$0xff]
      %603 = vset.pattern.permute.xlu0 0
      %604 = vperm.xlu0 %603, %v566
      %v605 = vpop.permute.xlu0 %604
      %608 = vset.pattern.permute.xlu0 0
      %609 = vperm.xlu0 %608, %v568
      %v610 = vpop.permute.xlu0 %609
      %v612 = vmul.f32 %v605, %v600
      %v613 = vmul.f32 %v610, %v601
      %v614 = vpack.c.bf16 %v582, %v582
      %v615 = vpack.c.bf16 %v584, %v584
      %v617 = vsel %vm491, %v614, 0
      %vm619 = vcmask 1043456
      %v621 = vsel %vm619, %v484, 0
      %623 = vmatpush.bf16.msra.mxu0 0
      %624 = vmatpush.bf16.msra.mxu0 0
      %625 = vmatpush.bf16.msra.mxu0 0
      %626 = vmatpush.bf16.msra.mxu0 0
      %627 = vmatpush.bf16.msra.mxu0 0
      %628 = vmatpush.bf16.msra.mxu0 0
      %629 = vmatpush.bf16.msra.mxu0 0
      %630 = vmatpush.bf16.msra.mxu0 %v621
      %631 = vmatmul.bf16.gmra.mxu0 %v617
      %v632 = vpop.f32.mrf.mxu0
      %v633 = vadd.f32 0.0, %v632
      %v634 = vpop.f32.mrf.mxu0
      %635 = vdwg.mxu0
      %v637 = vsel %vm491, %v615, 0
      %v640 = vsel %vm619, %v485, 0
      %642 = vmatpush.bf16.msra.mxu0 0
      %643 = vmatpush.bf16.msra.mxu0 0
      %644 = vmatpush.bf16.msra.mxu0 0
      %645 = vmatpush.bf16.msra.mxu0 0
      %646 = vmatpush.bf16.msra.mxu0 0
      %647 = vmatpush.bf16.msra.mxu0 0
      %648 = vmatpush.bf16.msra.mxu0 0
      %649 = vmatpush.bf16.msra.mxu0 %v640
      %650 = vmatmul.bf16.gmra.mxu0 %v637
      %v651 = vpop.f32.mrf.mxu0
      %v652 = vadd.f32 0.0, %v651
      %v653 = vpop.f32.mrf.mxu0
      %654 = vdwg.mxu0
      %v655 = vadd.f32 %v612, %v633
      %v656 = vadd.f32 %v613, %v652
      %657 = vst.msk [vmem:[#allocation4] sm:$0xff] %vm512, %v655
      %658 = vst.msk [vmem:[#allocation4 + $0x8] sm:$0xff] %vm512, %v656
      %659 = vst.msk [vmem:[#allocation2] sm:$0xff] %vm597, %v561
      %660 = vst.msk [vmem:[#allocation2 + $0x8] sm:$0xff] %vm597, %v562
      // Predicated region
      $region53: #{forward.8} parent=47 // pred_check
        %p661 = pneg %p465
      $region54: #{forward.8} parent=47 // pred_check_branch
        %663 = sbr.rel (%p661) target = $region56
      $region55: #{forward.8} parent=47 // pred_region
        %v664 = vld [vmem:[#allocation3] sm:$0xff]
        %v665 = vld [vmem:[#allocation3 + $0x8] sm:$0xff]
        %v666 = vmax.f32 %v664, 1e-30
        %v667 = vmax.f32 %v665, 1e-30
        %v668 = vld [vmem:[#allocation4] sm:$0xff]
        %v669 = vld [vmem:[#allocation4 + $0x8] sm:$0xff]
        %671 = vset.pattern.permute.xlu0 0
        %672 = vperm.xlu0 %671, %v666
        %v673 = vpop.permute.xlu0 %672
        %676 = vset.pattern.permute.xlu0 0
        %677 = vperm.xlu0 %676, %v667
        %v678 = vpop.permute.xlu0 %677
        %v680 = vrcp.pop %v673
        %v681 = vmul.f32 %v673, %v680
        %v682 = vsub.f32 1.0, %v681
        %v683 = vmul.f32 %v680, %v682
        %v684 = vadd.f32 %v680, %v683
        %vm685 = vweird.f32 %v673
        %vm686 = vweird.f32 %v680
        %vm687 = vmor %vm685, %vm686
        %v688 = vsel %vm687, %v680, %v684
        %v689 = vand.u32 2147483647, %v673
        %vm690 = vcmp.eq.f32.partialorder %v689, 8.507059e+37
        %v691 = vand.u32 %v673, 2147483648
        %v692 = vor.u32 1.1754944e-38, %v691
        %v693 = vsel %vm690, %v692, %v688
        %v694 = vmul.f32 %v668, %v693
        %v695 = vrcp.pop %v678
        %v696 = vmul.f32 %v678, %v695
        %v697 = vsub.f32 1.0, %v696
        %v698 = vmul.f32 %v695, %v697
        %v699 = vadd.f32 %v695, %v698
        %vm700 = vweird.f32 %v678
        %vm701 = vweird.f32 %v695
        %vm702 = vmor %vm700, %vm701
        %v703 = vsel %vm702, %v695, %v699
        %v704 = vand.u32 2147483647, %v678
        %vm705 = vcmp.eq.f32.partialorder %v704, 8.507059e+37
        %v706 = vand.u32 %v678, 2147483648
        %v707 = vor.u32 1.1754944e-38, %v706
        %v708 = vsel %vm705, %v707, %v703
        %v709 = vmul.f32 %v669, %v708
        %v710 = vpack.c.bf16 %v694, %v694
        %vm711 = vcmask 125952
        %712 = vst.msk [vmem:[#allocation5] sm:$0xf] %vm711, %v710
        %v713 = vpack.c.bf16 %v709, %v709
        %715 = vrot.lane.b32.xlu0 %v713, 16
        %v716 = vpop.permute.xlu0 %715
        %vm718 = vcmask 257152
        %719 = vst.msk [vmem:[#allocation5] sm:$0xf] %vm718, %v716
        %v720 = vld [vmem:[#allocation5] sm:$0xf]
        %v721 = vld [vmem:[%s6] sm:$0xf]
        %v722 = vld [vmem:[%s6 + $0x4] sm:$0xf]
        %v723 = vld [vmem:[%s6 + $0x8] sm:$0xf]
        %v724 = vld [vmem:[%s6 + $0xc] sm:$0xf]
        %v729 = vunpack.c.l.b16 %v721
        %v730 = vunpack.c.l.b16 %v722
        %v731 = vunpack.c.l.b16 %v723
        %v732 = vunpack.c.l.b16 %v724
        %v733 = vpack.c.b16 %v730, %v729
        %v734 = vpack.c.b16 %v732, %v731
        %vm737 = vcmask 261120
        %v739 = vsel %vm737, %v720, 0
        %741 = vmatpush.bf16.msra.mxu0 0
        %742 = vmatpush.bf16.msra.mxu0 0
        %743 = vmatpush.bf16.msra.mxu0 0
        %744 = vmatpush.bf16.msra.mxu0 0
        %745 = vmatpush.bf16.msra.mxu0 0
        %746 = vmatpush.bf16.msra.mxu0 0
        %747 = vmatpush.bf16.msra.mxu0 %v734
        %748 = vmatpush.bf16.msra.mxu0 %v733
        %749 = vmatmul.bf16.gmra.mxu0 %v739
        %v750 = vpop.f32.mrf.mxu0
        %v751 = vadd.f32 0.0, %v750
        %v752 = vpop.f32.mrf.mxu0
        %753 = vdwg.mxu0
        %v754 = vld [vmem:[%s456] sm:$0xff]
        %v755 = vadd.f32 %v754, %v751
        %756 = vst.msk [vmem:[%s463] sm:$0xff] %vm737, %v755
      $region56: #{forward.8} parent=47 // pred_fallthru
        _
      %p757 = scmp.lt.s32.totalorder %s23, 1
      %s758 = scalar_select %p757, %s23, 1
      %p759 = scmp.lt.s32.totalorder %s24, 0
      %s760 = scalar_select %p759, %s24, 0
      %s761 = sadd.s32 %s760, %s758
      %s762 = smul.addr %s761, 8
      %s763 = scalar_lea.vmem %s7, %s762
      // Predicated region
      $region57: #{forward.8} parent=47 // pred_check
        %p764 = pneg %p246
      $region58: #{forward.8} parent=47 // pred_check_branch
        %766 = sbr.rel (%p764) target = $region60
      $region59: #{forward.8} parent=47 // pred_region
        _
      $region60: #{forward.8} parent=47 // pred_fallthru
        _
    $region48: #{forward.8} parent=5 // pred_fallthru
      _
    %p767 = scmp.le.s32.totalorder 2, %s13
    // Predicated region
    $region61: #{forward.8} parent=5 // pred_check
      %p768 = pneg %p767
    $region62: #{forward.8} parent=5 // pred_check_branch
      %770 = sbr.rel (%p768) target = $region64
    $region63: #{forward.8} parent=5 // pred_region
      %s771 = ssub.s32 %s13, 2
      // Predicated region
      $region65: #{forward.8} parent=63 // pred_check
        %p772 = pneg %p252
      $region66: #{forward.8} parent=63 // pred_check_branch
        %774 = sbr.rel (%p772) target = $region68
      $region67: #{forward.8} parent=63 // pred_region
        %p775 = scmp.lt.s32.totalorder %s26, 1
        %s776 = scalar_select %p775, %s26, 1
        %p777 = scmp.lt.s32.totalorder %s27, 0
        %s778 = scalar_select %p777, %s27, 0
        %s779 = sadd.s32 %s778, %s776
        %s780 = smul.addr %s779, 8
        %s781 = scalar_lea.vmem %s7, %s780
      $region68: #{forward.8} parent=63 // pred_fallthru
        _
    $region64: #{forward.8} parent=5 // pred_fallthru
      _
  $region6: #{forward.8} parent=0 // loop_footer
    %s17 = sadd.s32 1, %s13
  $region7: #{forward.8} parent=0 // loop_footer_branch
    %12 = sbr.rel target = $region3
  $region8: #{forward.8} parent=0 // loop_exit
    _

</llo_original>
